<compile_context>
chip_gen: v5e
topology: v5e:2x2
jax: 0.10.0
libtpu: 0.0.40
codegen_flags: <defaults>
</compile_context>

<pallas_src>
import jax
import jax.numpy as jnp
from jax import lax
from jax.experimental import pallas as pl
from jax.experimental.pallas import tpu as pltpu


def _sigmoid_tanh(z):
    # sigmoid(z) == 0.5 * (tanh(z/2) + 1); tanh runs on the EUP slot.
    return 0.5 * (jnp.tanh(0.5 * z) + 1.0)


def _blstm_kernel(x_ref, w_in_f_ref, w_in_b_ref, b_f_ref, b_b_ref,
                  whh_f_ref, whh_b_ref,
                  out_ref,
                  gxf_sc, gxb_sc):
    """Fused single-layer bidirectional LSTM.

    x_ref       : (T, B, C)   bf16  input sequence (B padded to multiple of 8)
    w_in_*_ref  : (C, 4H)     bf16  Wih^T per direction (gate order i,f,o,g)
    b_*_ref     : (1, 4H)     f32   b_ih + b_hh per direction
    whh_*_ref   : (H, 4H)     bf16  Whh^T per direction
    out_ref     : (T, B, 2H)  f32   [:, :, :H] = forward, [:, :, H:] = backward
    gx*_sc      : (T, B, 4H)  bf16  precomputed x-projection + bias per dir
    """
    T, B, C = x_ref.shape
    H = whh_f_ref.shape[0]

    # ---- hoisted, T-chunked input projection (both directions) ----
    # chunk size: aim for >= ~256 MXU rows per matmul, keep temporaries small.
    Tc = max(1, min(T, -(-256 // B)))
    n_chunks = -(-T // Tc)
    for ci in range(n_chunks):
        c0 = ci * Tc
        tc = min(Tc, T - c0)
        xc = x_ref[c0:c0 + tc].reshape(tc * B, C)          # bf16 (tc*B, C)
        gf = jnp.dot(xc, w_in_f_ref[...],
                     preferred_element_type=jnp.float32) + b_f_ref[...]
        gb = jnp.dot(xc, w_in_b_ref[...],
                     preferred_element_type=jnp.float32) + b_b_ref[...]
        gxf_sc[c0:c0 + tc] = gf.reshape(tc, B, 4 * H).astype(jnp.bfloat16)
        gxb_sc[c0:c0 + tc] = gb.reshape(tc, B, 4 * H).astype(jnp.bfloat16)

    def cell(gates, c_prev):
        # gate order [i, f, o, g]: one contiguous sigmoid block + one tanh
        sig = _sigmoid_tanh(gates[:, 0:3 * H])
        i_g = sig[:, 0 * H:1 * H]
        f_g = sig[:, 1 * H:2 * H]
        o_g = sig[:, 2 * H:3 * H]
        g_g = jnp.tanh(gates[:, 3 * H:4 * H])
        c_new = f_g * c_prev + i_g * g_g
        h_new = o_g * jnp.tanh(c_new)
        return h_new, c_new

    # ---- fused forward + backward recurrence; h/c carried in vregs ----
    def body(i, carry):
        hf, cf, hb, cb = carry
        tb = T - 1 - i

        # two independent recurrent matmuls issued back-to-back on the MXU
        rec_f = jnp.dot(hf.astype(jnp.bfloat16), whh_f_ref[...],
                        preferred_element_type=jnp.float32)
        rec_b = jnp.dot(hb.astype(jnp.bfloat16), whh_b_ref[...],
                        preferred_element_type=jnp.float32)

        gates_f = gxf_sc[i].astype(jnp.float32) + rec_f     # (B, 4H) f32
        gates_b = gxb_sc[tb].astype(jnp.float32) + rec_b

        hf_new, cf_new = cell(gates_f, cf)
        hb_new, cb_new = cell(gates_b, cb)

        out_ref[i, :, 0:H] = hf_new.astype(out_ref.dtype)
        out_ref[tb, :, H:2 * H] = hb_new.astype(out_ref.dtype)
        return (hf_new, cf_new, hb_new, cb_new)

    zeros = jnp.zeros((B, H), jnp.float32)
    lax.fori_loop(0, T, body, (zeros, zeros, zeros, zeros))


def init_blstm_params(key, channel, hidden):
    """PyTorch-style uniform(-1/sqrt(H), 1/sqrt(H)) init. Gate order i,f,g,o."""
    k = 1.0 / (hidden ** 0.5)
    keys = jax.random.split(key, 8)

    def u(kk, shape):
        return jax.random.uniform(kk, shape, jnp.float32, -k, k)

    wih_f = u(keys[0], (4 * hidden, channel))
    whh_f = u(keys[1], (4 * hidden, hidden))
    bih_f = u(keys[2], (4 * hidden,))
    bhh_f = u(keys[3], (4 * hidden,))
    wih_b = u(keys[4], (4 * hidden, channel))
    whh_b = u(keys[5], (4 * hidden, hidden))
    bih_b = u(keys[6], (4 * hidden,))
    bhh_b = u(keys[7], (4 * hidden,))
    return (wih_f, whh_f, bih_f, bhh_f, wih_b, whh_b, bih_b, bhh_b)


def _reorder_gates(w, hidden):
    """PyTorch gate order [i, f, g, o] -> kernel order [i, f, o, g] (axis 0)."""
    return jnp.concatenate(
        [w[:2 * hidden], w[3 * hidden:4 * hidden], w[2 * hidden:3 * hidden]],
        axis=0)


def blstm_pallas(x, params):
    """x: (1, C, H, W) float32  ->  (1, 2*hidden, H, W) float32."""
    (wih_f, whh_f, bih_f, bhh_f, wih_b, whh_b, bih_b, bhh_b) = params
    N, C, Himg, W = x.shape
    assert N == 1, "The batch size of x must be 1."
    H = whh_f.shape[1]                                 # hidden units
    # gate slices / output halves are lane slices at multiples of H
    assert H % 128 == 0, "hidden_unit must be a multiple of 128 (lane width)."

    # x.transpose(1, 3)[0] -> (T=W, B=Himg, C)
    seq = jnp.transpose(x, (0, 3, 2, 1))[0]
    T, B, _ = seq.shape

    # pad B (image height == LSTM batch) to a sublane multiple of 8;
    # batch rows are independent, so padding is exact and sliced off below.
    B_pad = -(-B // 8) * 8
    if B_pad != B:
        seq = jnp.pad(seq, ((0, 0), (0, B_pad - B), (0, 0)))
    seq = seq.astype(jnp.bfloat16)                     # matmul operand dtype

    # per-direction weights/biases, gate order [i, f, o, g], bf16 MXU operands
    w_in_f = _reorder_gates(wih_f, H).T.astype(jnp.bfloat16)   # (C, 4H)
    w_in_b = _reorder_gates(wih_b, H).T.astype(jnp.bfloat16)
    whh_f_t = _reorder_gates(whh_f, H).T.astype(jnp.bfloat16)  # (H, 4H)
    whh_b_t = _reorder_gates(whh_b, H).T.astype(jnp.bfloat16)
    b_f = _reorder_gates(bih_f + bhh_f, H).reshape(1, 4 * H).astype(jnp.float32)
    b_b = _reorder_gates(bih_b + bhh_b, H).reshape(1, 4 * H).astype(jnp.float32)

    # ---- VMEM budget: ~13/16 of physical VMEM, request only what's needed ----
    try:
        vmem_cap = int(pltpu.get_tpu_info().vmem_capacity_bytes)
    except Exception:                                  # pragma: no cover
        vmem_cap = 128 * 1024 * 1024
    cap = (vmem_cap * 13) // 16                        # ~104 MiB v5e/v6e, ~52 MiB v7x

    Tc = max(1, min(T, -(-256 // B_pad)))
    est = (T * B_pad * C * 2                           # seq bf16
           + 2 * C * 4 * H * 2                         # input weights bf16
           + 2 * H * 4 * H * 2                         # recurrent weights bf16
           + 2 * 4 * H * 4                             # biases f32
           + 2 * T * B_pad * 4 * H * 2                 # gx scratches bf16
           + T * B_pad * 2 * H * 4                     # output f32
           + 2 * Tc * B_pad * 8 * H * 4)               # projection temporaries
    vmem_limit = int(min(cap, max(32 * 1024 * 1024, 2 * est)))

    vmem = pl.BlockSpec(memory_space=pltpu.MemorySpace.VMEM)
    out = pl.pallas_call(
        _blstm_kernel,
        out_shape=jax.ShapeDtypeStruct((T, B_pad, 2 * H), jnp.float32),
        in_specs=[vmem] * 7,
        out_specs=vmem,
        scratch_shapes=[
            pltpu.VMEM((T, B_pad, 4 * H), jnp.bfloat16),   # gx forward
            pltpu.VMEM((T, B_pad, 4 * H), jnp.bfloat16),   # gx backward
        ],
        compiler_params=pltpu.CompilerParams(vmem_limit_bytes=vmem_limit),
    )(seq, w_in_f, w_in_b, b_f, b_b, whh_f_t, whh_b_t)

    out = out[:, :B, :]                                   # strip B padding
    recurrent = out[jnp.newaxis]                          # (1, W, Himg, 2H)
    return jnp.transpose(recurrent, (0, 3, 2, 1))         # (1, 2H, Himg, W)


# ----------------------- pure-JAX reference (for checking) -----------------
def _lstm_dir_ref(seq, wih, whh, bih, bhh, hidden, reverse=False):
    wih_t, whh_t = wih.T, whh.T
    b = bih + bhh
    if reverse:
        seq = seq[::-1]

    def step(carry, xt):
        h, c = carry
        gates = xt @ wih_t + h @ whh_t + b
        i = jax.nn.sigmoid(gates[:, :hidden])
        f = jax.nn.sigmoid(gates[:, hidden:2 * hidden])
        g = jnp.tanh(gates[:, 2 * hidden:3 * hidden])
        o = jax.nn.sigmoid(gates[:, 3 * hidden:])
        c = f * c + i * g
        h = o * jnp.tanh(c)
        return (h, c), h

    B = seq.shape[1]
    init = (jnp.zeros((B, hidden), jnp.float32),
            jnp.zeros((B, hidden), jnp.float32))
    _, hs = lax.scan(step, init, seq)
    if reverse:
        hs = hs[::-1]
    return hs


def blstm_ref(x, params):
    (wih_f, whh_f, bih_f, bhh_f, wih_b, whh_b, bih_b, bhh_b) = params
    hidden = whh_f.shape[1]
    seq = jnp.transpose(x, (0, 3, 2, 1))[0]
    hf = _lstm_dir_ref(seq, wih_f, whh_f, bih_f, bhh_f, hidden, reverse=False)
    hb = _lstm_dir_ref(seq, wih_b, whh_b, bih_b, bhh_b, hidden, reverse=True)
    rec = jnp.concatenate([hf, hb], axis=-1)[jnp.newaxis]
    return jnp.transpose(rec, (0, 3, 2, 1))


if __name__ == "__main__":
    key = jax.random.PRNGKey(0)
    kx, kp = jax.random.split(key)

    # H=128 keeps gate slices / output halves lane-aligned (multiples of 128);
    # Himg=20 exercises the B->24 sublane padding path.  Module requires N=1.
    channel, hidden = 64, 128
    N, Himg, Wimg = 1, 20, 12
    x = jax.random.normal(kx, (N, channel, Himg, Wimg), jnp.float32)
    params = init_blstm_params(kp, channel, hidden)

    out = blstm_pallas(x, params)
    out = jax.block_until_ready(out)

    assert out.shape == (1, 2 * hidden, Himg, Wimg), out.shape

    ref = blstm_ref(x, params)
    max_err = float(jnp.max(jnp.abs(out - ref)))
    # bf16 MXU operands + bf16 gate scratch -> loosened tolerance
    # (cell/state elementwise math stays f32)
    assert jnp.allclose(out, ref, atol=3e-2, rtol=3e-2), max_err

    print("KERNEL_OK")
</pallas_src>

<mosaic_0001>
module attributes {stable_mosaic.version = 11 : i64} {
  func.func @_blstm_kernel(%arg0: memref<12x24x64xbf16, #tpu.memory_space<vmem>>, %arg1: memref<64x512xbf16, #tpu.memory_space<vmem>>, %arg2: memref<64x512xbf16, #tpu.memory_space<vmem>>, %arg3: memref<1x512xf32, #tpu.memory_space<vmem>>, %arg4: memref<1x512xf32, #tpu.memory_space<vmem>>, %arg5: memref<128x512xbf16, #tpu.memory_space<vmem>>, %arg6: memref<128x512xbf16, #tpu.memory_space<vmem>>, %arg7: memref<12x24x256xf32, #tpu.memory_space<vmem>>, %arg8: memref<12x24x512xbf16, #tpu.memory_space<vmem>>, %arg9: memref<12x24x512xbf16, #tpu.memory_space<vmem>>) attributes {dimension_semantics = [], scalar_prefetch = 0 : i64, scratch_operands = 2 : i64, tpu.core_type = #tpu.core_type<tc>} {
    %c0 = arith.constant 0 : index
    %c0_0 = arith.constant 0 : index
    %c0_1 = arith.constant 0 : index
    %0 = vector.load %arg0[%c0, %c0_0, %c0_1] : memref<12x24x64xbf16, #tpu.memory_space<vmem>>, vector<11x24x64xbf16>
    %1 = vector.shape_cast %0 : vector<11x24x64xbf16> to vector<264x64xbf16>
    %c0_2 = arith.constant 0 : index
    %c0_3 = arith.constant 0 : index
    %2 = vector.load %arg1[%c0_2, %c0_3] : memref<64x512xbf16, #tpu.memory_space<vmem>>, vector<64x512xbf16>
    %cst = arith.constant dense<0.000000e+00> : vector<264x512xf32>
    %3 = tpu.matmul %1, %2, %cst {dimension_numbers = #tpu.dot_dimension_numbers<[1], [0], [0], [1], [0, 0, 1, 1], [], []>} : vector<264x64xbf16>, vector<64x512xbf16>, vector<264x512xf32> -> vector<264x512xf32>
    %c0_4 = arith.constant 0 : index
    %c0_5 = arith.constant 0 : index
    %4 = vector.load %arg3[%c0_4, %c0_5] : memref<1x512xf32, #tpu.memory_space<vmem>>, vector<1x512xf32>
    %5 = vector.broadcast %4 : vector<1x512xf32> to vector<264x512xf32>
    %6 = arith.addf %3, %5 : vector<264x512xf32>
    %c0_6 = arith.constant 0 : index
    %c0_7 = arith.constant 0 : index
    %7 = vector.load %arg2[%c0_6, %c0_7] : memref<64x512xbf16, #tpu.memory_space<vmem>>, vector<64x512xbf16>
    %cst_8 = arith.constant dense<0.000000e+00> : vector<264x512xf32>
    %8 = tpu.matmul %1, %7, %cst_8 {dimension_numbers = #tpu.dot_dimension_numbers<[1], [0], [0], [1], [0, 0, 1, 1], [], []>} : vector<264x64xbf16>, vector<64x512xbf16>, vector<264x512xf32> -> vector<264x512xf32>
    %c0_9 = arith.constant 0 : index
    %c0_10 = arith.constant 0 : index
    %9 = vector.load %arg4[%c0_9, %c0_10] : memref<1x512xf32, #tpu.memory_space<vmem>>, vector<1x512xf32>
    %10 = vector.broadcast %9 : vector<1x512xf32> to vector<264x512xf32>
    %11 = arith.addf %8, %10 : vector<264x512xf32>
    %12 = vector.shape_cast %6 : vector<264x512xf32> to vector<11x24x512xf32>
    %13 = arith.truncf %12 : vector<11x24x512xf32> to vector<11x24x512xbf16>
    %c0_11 = arith.constant 0 : index
    %c0_12 = arith.constant 0 : index
    %c0_13 = arith.constant 0 : index
    %14 = vector.load %arg8[%c0_11, %c0_12, %c0_13] : memref<12x24x512xbf16, #tpu.memory_space<vmem>>, vector<11x24x512xbf16>
    tpu.vector_store %arg8[%c0_11, %c0_12, %c0_13], %13 {strides = array<i32>} : memref<12x24x512xbf16, #tpu.memory_space<vmem>>, vector<11x24x512xbf16>,
    %15 = vector.shape_cast %11 : vector<264x512xf32> to vector<11x24x512xf32>
    %16 = arith.truncf %15 : vector<11x24x512xf32> to vector<11x24x512xbf16>
    %c0_14 = arith.constant 0 : index
    %c0_15 = arith.constant 0 : index
    %c0_16 = arith.constant 0 : index
    %17 = vector.load %arg9[%c0_14, %c0_15, %c0_16] : memref<12x24x512xbf16, #tpu.memory_space<vmem>>, vector<11x24x512xbf16>
    tpu.vector_store %arg9[%c0_14, %c0_15, %c0_16], %16 {strides = array<i32>} : memref<12x24x512xbf16, #tpu.memory_space<vmem>>, vector<11x24x512xbf16>,
    %c11 = arith.constant 11 : index
    %c0_17 = arith.constant 0 : index
    %c0_18 = arith.constant 0 : index
    %18 = vector.load %arg0[%c11, %c0_17, %c0_18] : memref<12x24x64xbf16, #tpu.memory_space<vmem>>, vector<1x24x64xbf16>
    %19 = vector.shape_cast %18 : vector<1x24x64xbf16> to vector<24x64xbf16>
    %c0_19 = arith.constant 0 : index
    %c0_20 = arith.constant 0 : index
    %20 = vector.load %arg1[%c0_19, %c0_20] : memref<64x512xbf16, #tpu.memory_space<vmem>>, vector<64x512xbf16>
    %cst_21 = arith.constant dense<0.000000e+00> : vector<24x512xf32>
    %21 = tpu.matmul %19, %20, %cst_21 {dimension_numbers = #tpu.dot_dimension_numbers<[1], [0], [0], [1], [0, 0, 1, 1], [], []>} : vector<24x64xbf16>, vector<64x512xbf16>, vector<24x512xf32> -> vector<24x512xf32>
    %c0_22 = arith.constant 0 : index
    %c0_23 = arith.constant 0 : index
    %22 = vector.load %arg3[%c0_22, %c0_23] : memref<1x512xf32, #tpu.memory_space<vmem>>, vector<1x512xf32>
    %23 = vector.broadcast %22 : vector<1x512xf32> to vector<24x512xf32>
    %24 = arith.addf %21, %23 : vector<24x512xf32>
    %c0_24 = arith.constant 0 : index
    %c0_25 = arith.constant 0 : index
    %25 = vector.load %arg2[%c0_24, %c0_25] : memref<64x512xbf16, #tpu.memory_space<vmem>>, vector<64x512xbf16>
    %cst_26 = arith.constant dense<0.000000e+00> : vector<24x512xf32>
    %26 = tpu.matmul %19, %25, %cst_26 {dimension_numbers = #tpu.dot_dimension_numbers<[1], [0], [0], [1], [0, 0, 1, 1], [], []>} : vector<24x64xbf16>, vector<64x512xbf16>, vector<24x512xf32> -> vector<24x512xf32>
    %c0_27 = arith.constant 0 : index
    %c0_28 = arith.constant 0 : index
    %27 = vector.load %arg4[%c0_27, %c0_28] : memref<1x512xf32, #tpu.memory_space<vmem>>, vector<1x512xf32>
    %28 = vector.broadcast %27 : vector<1x512xf32> to vector<24x512xf32>
    %29 = arith.addf %26, %28 : vector<24x512xf32>
    %30 = vector.shape_cast %24 : vector<24x512xf32> to vector<1x24x512xf32>
    %31 = arith.truncf %30 : vector<1x24x512xf32> to vector<1x24x512xbf16>
    %c11_29 = arith.constant 11 : index
    %c0_30 = arith.constant 0 : index
    %c0_31 = arith.constant 0 : index
    %32 = vector.load %arg8[%c11_29, %c0_30, %c0_31] : memref<12x24x512xbf16, #tpu.memory_space<vmem>>, vector<1x24x512xbf16>
    tpu.vector_store %arg8[%c11_29, %c0_30, %c0_31], %31 {strides = array<i32>} : memref<12x24x512xbf16, #tpu.memory_space<vmem>>, vector<1x24x512xbf16>,
    %33 = vector.shape_cast %29 : vector<24x512xf32> to vector<1x24x512xf32>
    %34 = arith.truncf %33 : vector<1x24x512xf32> to vector<1x24x512xbf16>
    %c11_32 = arith.constant 11 : index
    %c0_33 = arith.constant 0 : index
    %c0_34 = arith.constant 0 : index
    %35 = vector.load %arg9[%c11_32, %c0_33, %c0_34] : memref<12x24x512xbf16, #tpu.memory_space<vmem>>, vector<1x24x512xbf16>
    tpu.vector_store %arg9[%c11_32, %c0_33, %c0_34], %34 {strides = array<i32>} : memref<12x24x512xbf16, #tpu.memory_space<vmem>>, vector<1x24x512xbf16>,
    %cst_35 = arith.constant 0.000000e+00 : f32
    %36 = vector.broadcast %cst_35 : f32 to vector<24x128xf32>
    %c0_i32 = arith.constant 0 : i32
    %c12_i32 = arith.constant 12 : i32
    %37 = arith.addi %c0_i32, %c12_i32 : i32
    %c1_i32 = arith.constant 1 : i32
    %38:4 = scf.for %arg10 = %c0_i32 to %37 step %c1_i32 iter_args(%arg11 = %36, %arg12 = %36, %arg13 = %36, %arg14 = %36) -> (vector<24x128xf32>, vector<24x128xf32>, vector<24x128xf32>, vector<24x128xf32>)  : i32 {
      %c11_i32 = arith.constant 11 : i32
      %39 = arith.subi %c11_i32, %arg10 : i32
      %40 = arith.truncf %arg11 : vector<24x128xf32> to vector<24x128xbf16>
      %c0_37 = arith.constant 0 : index
      %c0_38 = arith.constant 0 : index
      %41 = vector.load %arg5[%c0_37, %c0_38] : memref<128x512xbf16, #tpu.memory_space<vmem>>, vector<128x512xbf16>
      %cst_39 = arith.constant dense<0.000000e+00> : vector<24x512xf32>
      %42 = tpu.matmul %40, %41, %cst_39 {dimension_numbers = #tpu.dot_dimension_numbers<[1], [0], [0], [1], [0, 0, 1, 1], [], []>} : vector<24x128xbf16>, vector<128x512xbf16>, vector<24x512xf32> -> vector<24x512xf32>
      %43 = arith.truncf %arg13 : vector<24x128xf32> to vector<24x128xbf16>
      %c0_40 = arith.constant 0 : index
      %c0_41 = arith.constant 0 : index
      %44 = vector.load %arg6[%c0_40, %c0_41] : memref<128x512xbf16, #tpu.memory_space<vmem>>, vector<128x512xbf16>
      %cst_42 = arith.constant dense<0.000000e+00> : vector<24x512xf32>
      %45 = tpu.matmul %43, %44, %cst_42 {dimension_numbers = #tpu.dot_dimension_numbers<[1], [0], [0], [1], [0, 0, 1, 1], [], []>} : vector<24x128xbf16>, vector<128x512xbf16>, vector<24x512xf32> -> vector<24x512xf32>
      %46 = arith.index_cast %arg10 : i32 to index
      %c0_43 = arith.constant 0 : index
      %c0_44 = arith.constant 0 : index
      %47 = vector.load %arg8[%46, %c0_43, %c0_44] : memref<12x24x512xbf16, #tpu.memory_space<vmem>>, vector<1x24x512xbf16>
      %48 = vector.shape_cast %47 : vector<1x24x512xbf16> to vector<24x512xbf16>
      %49 = arith.extf %48 : vector<24x512xbf16> to vector<24x512xf32>
      %50 = arith.addf %49, %42 : vector<24x512xf32>
      %51 = arith.index_cast %39 : i32 to index
      %c0_45 = arith.constant 0 : index
      %c0_46 = arith.constant 0 : index
      %52 = vector.load %arg9[%51, %c0_45, %c0_46] : memref<12x24x512xbf16, #tpu.memory_space<vmem>>, vector<1x24x512xbf16>
      %53 = vector.shape_cast %52 : vector<1x24x512xbf16> to vector<24x512xbf16>
      %54 = arith.extf %53 : vector<24x512xbf16> to vector<24x512xf32>
      %55 = arith.addf %54, %45 : vector<24x512xf32>
      %56 = vector.extract_strided_slice %50 {offsets = [0, 0], sizes = [24, 384], strides = [1, 1]} : vector<24x512xf32> to vector<24x384xf32>
      %cst_47 = arith.constant 5.000000e-01 : f32
      %57 = vector.broadcast %cst_47 : f32 to vector<24x384xf32>
      %58 = arith.mulf %57, %56 : vector<24x384xf32>
      %59 = math.tanh %58 : vector<24x384xf32>
      %cst_48 = arith.constant 1.000000e+00 : f32
      %60 = vector.broadcast %cst_48 : f32 to vector<24x384xf32>
      %61 = arith.addf %59, %60 : vector<24x384xf32>
      %cst_49 = arith.constant 5.000000e-01 : f32
      %62 = vector.broadcast %cst_49 : f32 to vector<24x384xf32>
      %63 = arith.mulf %62, %61 : vector<24x384xf32>
      %64 = vector.extract_strided_slice %63 {offsets = [0, 0], sizes = [24, 128], strides = [1, 1]} : vector<24x384xf32> to vector<24x128xf32>
      %65 = vector.extract_strided_slice %63 {offsets = [0, 128], sizes = [24, 128], strides = [1, 1]} : vector<24x384xf32> to vector<24x128xf32>
      %66 = vector.extract_strided_slice %63 {offsets = [0, 256], sizes = [24, 128], strides = [1, 1]} : vector<24x384xf32> to vector<24x128xf32>
      %67 = vector.extract_strided_slice %50 {offsets = [0, 384], sizes = [24, 128], strides = [1, 1]} : vector<24x512xf32> to vector<24x128xf32>
      %68 = math.tanh %67 : vector<24x128xf32>
      %69 = arith.mulf %65, %arg12 : vector<24x128xf32>
      %70 = arith.mulf %64, %68 : vector<24x128xf32>
      %71 = arith.addf %69, %70 : vector<24x128xf32>
      %72 = math.tanh %71 : vector<24x128xf32>
      %73 = arith.mulf %66, %72 : vector<24x128xf32>
      %74 = vector.extract_strided_slice %55 {offsets = [0, 0], sizes = [24, 384], strides = [1, 1]} : vector<24x512xf32> to vector<24x384xf32>
      %cst_50 = arith.constant 5.000000e-01 : f32
      %75 = vector.broadcast %cst_50 : f32 to vector<24x384xf32>
      %76 = arith.mulf %75, %74 : vector<24x384xf32>
      %77 = math.tanh %76 : vector<24x384xf32>
      %cst_51 = arith.constant 1.000000e+00 : f32
      %78 = vector.broadcast %cst_51 : f32 to vector<24x384xf32>
      %79 = arith.addf %77, %78 : vector<24x384xf32>
      %cst_52 = arith.constant 5.000000e-01 : f32
      %80 = vector.broadcast %cst_52 : f32 to vector<24x384xf32>
      %81 = arith.mulf %80, %79 : vector<24x384xf32>
      %82 = vector.extract_strided_slice %81 {offsets = [0, 0], sizes = [24, 128], strides = [1, 1]} : vector<24x384xf32> to vector<24x128xf32>
      %83 = vector.extract_strided_slice %81 {offsets = [0, 128], sizes = [24, 128], strides = [1, 1]} : vector<24x384xf32> to vector<24x128xf32>
      %84 = vector.extract_strided_slice %81 {offsets = [0, 256], sizes = [24, 128], strides = [1, 1]} : vector<24x384xf32> to vector<24x128xf32>
      %85 = vector.extract_strided_slice %55 {offsets = [0, 384], sizes = [24, 128], strides = [1, 1]} : vector<24x512xf32> to vector<24x128xf32>
      %86 = math.tanh %85 : vector<24x128xf32>
      %87 = arith.mulf %83, %arg14 : vector<24x128xf32>
      %88 = arith.mulf %82, %86 : vector<24x128xf32>
      %89 = arith.addf %87, %88 : vector<24x128xf32>
      %90 = math.tanh %89 : vector<24x128xf32>
      %91 = arith.mulf %84, %90 : vector<24x128xf32>
      %92 = arith.index_cast %arg10 : i32 to index
      %c0_53 = arith.constant 0 : index
      %c0_54 = arith.constant 0 : index
      %93 = vector.load %arg7[%92, %c0_53, %c0_54] : memref<12x24x256xf32, #tpu.memory_space<vmem>>, vector<1x24x128xf32>
      %94 = vector.shape_cast %93 : vector<1x24x128xf32> to vector<24x128xf32>
      %95 = vector.shape_cast %73 : vector<24x128xf32> to vector<1x24x128xf32>
      tpu.vector_store %arg7[%92, %c0_53, %c0_54], %95 {strides = array<i32>} : memref<12x24x256xf32, #tpu.memory_space<vmem>>, vector<1x24x128xf32>,
      %96 = arith.index_cast %39 : i32 to index
      %c0_55 = arith.constant 0 : index
      %c128 = arith.constant 128 : index
      %97 = vector.load %arg7[%96, %c0_55, %c128] : memref<12x24x256xf32, #tpu.memory_space<vmem>>, vector<1x24x128xf32>
      %98 = vector.shape_cast %97 : vector<1x24x128xf32> to vector<24x128xf32>
      %99 = vector.shape_cast %91 : vector<24x128xf32> to vector<1x24x128xf32>
      tpu.vector_store %arg7[%96, %c0_55, %c128], %99 {strides = array<i32>} : memref<12x24x256xf32, #tpu.memory_space<vmem>>, vector<1x24x128xf32>,
      scf.yield %73, %71, %91, %89 : vector<24x128xf32>, vector<24x128xf32>, vector<24x128xf32>, vector<24x128xf32>
    }
    %c12_i32_36 = arith.constant 12 : i32
    return
  }
}

</mosaic_0001>

<llo_original>
// kernel: tpu_custom_call.1
$region0: #{tpu_custom_call.1}
  #allocation0 [shape = 'u32[]', space=smem, size = 0x4, offset = 0x4, fixed_abs, tag = 'smem constant byte address 0x4 - core index']
  #allocation1 [shape = 'u32[72,128]{1,0:T(1,128)}', space=vmem, size = 0x9000, scoped, tag = 'internal scratch']
  #allocation2 [shape = 'bf16[12,24,512]{2,1,0:T(8,128)(2,1)}', space=vmem, size = 0x48000, scoped, tag = 'scratch operand']
  #allocation3 [shape = 'bf16[12,24,512]{2,1,0:T(8,128)(2,1)}', space=vmem, size = 0x48000, scoped, tag = 'scratch operand']
  %s0 = inlined_call_operand.hbm [shape: bf16[12,24,64], index: 0, kind: input, shape index: {}]
  %s1 = inlined_call_operand.hbm [shape: bf16[64,512], index: 1, kind: input, shape index: {}]
  %s2 = inlined_call_operand.hbm [shape: bf16[64,512], index: 2, kind: input, shape index: {}]
  %s3 = inlined_call_operand.hbm [shape: f32[1,512], index: 3, kind: input, shape index: {}]
  %s4 = inlined_call_operand.hbm [shape: f32[1,512], index: 4, kind: input, shape index: {}]
  %s5 = inlined_call_operand.hbm [shape: bf16[128,512], index: 5, kind: input, shape index: {}]
  %s6 = inlined_call_operand.hbm [shape: bf16[128,512], index: 6, kind: input, shape index: {}]
  %s7 = inlined_call_operand.hbm [shape: f32[12,24,256], index: 7, kind: output, shape index: {}]
  %s8 = sld [smem:[#allocation0]]
  $region73: #{tpu_custom_call.1} parent=0
    _
  %s10 = ssub.s32 1, %s8
  %s11 = scalar_select 0, %s10, %s8
  $region1: #{tpu_custom_call.1} parent=0
    #allocation4 [shape = 'u8[73728]{0}', space=vmem, size = 0x12000, scoped, tag = 'input window, operand 0, single buffered']
    #allocation5 [shape = 's32[1]{0}', space=sflag, size = 0x4, scoped, tag = 'scoped memory for tpu_custom_call.1']
    #allocation6 [shape = 's32[1]{0}', space=sflag, size = 0x4, scoped, tag = 'scoped memory for tpu_custom_call.1']
    #allocation7 [shape = 'u8[65536]{0}', space=vmem, size = 0x10000, scoped, tag = 'input window, operand 1, single buffered']
    #allocation8 [shape = 's32[1]{0}', space=sflag, size = 0x4, scoped, tag = 'scoped memory for tpu_custom_call.1']
    #allocation9 [shape = 'u8[65536]{0}', space=vmem, size = 0x10000, scoped, tag = 'input window, operand 2, single buffered']
    #allocation10 [shape = 'u8[2048]{0}', space=vmem, size = 0x800, scoped, tag = 'input window, operand 3, single buffered']
    #allocation11 [shape = 's32[1]{0}', space=sflag, size = 0x4, scoped, tag = 'scoped memory for tpu_custom_call.1']
    #allocation12 [shape = 'u8[2048]{0}', space=vmem, size = 0x800, scoped, tag = 'input window, operand 4, single buffered']
    #allocation13 [shape = 'u8[131072]{0}', space=vmem, size = 0x20000, scoped, tag = 'input window, operand 5, single buffered']
    #allocation14 [shape = 's32[1]{0}', space=sflag, size = 0x4, scoped, tag = 'scoped memory for tpu_custom_call.1']
    #allocation15 [shape = 'u8[131072]{0}', space=vmem, size = 0x20000, scoped, tag = 'input window, operand 6, single buffered']
    #allocation16 [shape = 'u8[294912]{0}', space=vmem, size = 0x48000, scoped, tag = 'output window, operand 0, single buffered']
    %12 = vsyncpa [#allocation5], 0
    %13 = vsyncpa [#allocation8], 0
    %14 = vsyncpa [#allocation11], 0
    %15 = vsyncpa [#allocation14], 0
    %16 = vsyncpa [#allocation6], 0
    // Predicated region
    $region2: #{tpu_custom_call.1} parent=1 // pred_check
      _
    $region3: #{tpu_custom_call.1} parent=1 // pred_check_branch
      %18 = sbr.rel (0) target = $region5
    $region4: #{tpu_custom_call.1} parent=1 // pred_region
      %20 = vsyncadd [#allocation5], 0
      %s21 = sshll.u32 %s0, 4
      %s22 = int_to_ptr.hbm [resolvable:$true] %s21
      %s23 = sshll.u32 [#allocation4], 4
      %s24 = int_to_ptr.vmem [resolvable:$true] %s23
      %29 = dma.hbm_to_vmem [thread:$0]  %s22, 2304, %s24, [#allocation5], 64, 64, 4
    $region5: #{tpu_custom_call.1} parent=1 // pred_fallthru
      _
    // Predicated region
    $region6: #{tpu_custom_call.1} parent=1 // pred_check
      _
    $region7: #{tpu_custom_call.1} parent=1 // pred_check_branch
      %31 = sbr.rel (0) target = $region9
    $region8: #{tpu_custom_call.1} parent=1 // pred_region
      %33 = vsyncadd [#allocation8], 0
      %s34 = sshll.u32 %s1, 4
      %s35 = int_to_ptr.hbm [resolvable:$true] %s34
      %s36 = sshll.u32 [#allocation7], 4
      %s37 = int_to_ptr.vmem [resolvable:$true] %s36
      %42 = dma.hbm_to_vmem [thread:$0]  %s35, 2048, %s37, [#allocation8], 256, 256, 16
    $region9: #{tpu_custom_call.1} parent=1 // pred_fallthru
      _
    // Predicated region
    $region10: #{tpu_custom_call.1} parent=1 // pred_check
      _
    $region11: #{tpu_custom_call.1} parent=1 // pred_check_branch
      %44 = sbr.rel (0) target = $region13
    $region12: #{tpu_custom_call.1} parent=1 // pred_region
      %46 = vsyncadd [#allocation8], 0
      %s47 = sshll.u32 %s2, 4
      %s48 = int_to_ptr.hbm [resolvable:$true] %s47
      %s49 = sshll.u32 [#allocation9], 4
      %s50 = int_to_ptr.vmem [resolvable:$true] %s49
      %55 = dma.hbm_to_vmem [thread:$0]  %s48, 2048, %s50, [#allocation8], 256, 256, 16
    $region13: #{tpu_custom_call.1} parent=1 // pred_fallthru
      _
    // Predicated region
    $region14: #{tpu_custom_call.1} parent=1 // pred_check
      _
    $region15: #{tpu_custom_call.1} parent=1 // pred_check_branch
      %57 = sbr.rel (0) target = $region17
    $region16: #{tpu_custom_call.1} parent=1 // pred_region
      %59 = vsyncadd [#allocation11], 0
      %s61 = sshll.u32 %s3, 4
      %s62 = int_to_ptr.hbm [resolvable:$true] %s61
      %s63 = sshll.u32 [#allocation10], 4
      %s64 = int_to_ptr.vmem [resolvable:$true] %s63
      %66 = dma.hbm_to_vmem [thread:$0]  %s62, 64, %s64, [#allocation11]
    $region17: #{tpu_custom_call.1} parent=1 // pred_fallthru
      _
    // Predicated region
    $region18: #{tpu_custom_call.1} parent=1 // pred_check
      _
    $region19: #{tpu_custom_call.1} parent=1 // pred_check_branch
      %68 = sbr.rel (0) target = $region21
    $region20: #{tpu_custom_call.1} parent=1 // pred_region
      %70 = vsyncadd [#allocation11], 0
      %s72 = sshll.u32 %s4, 4
      %s73 = int_to_ptr.hbm [resolvable:$true] %s72
      %s74 = sshll.u32 [#allocation12], 4
      %s75 = int_to_ptr.vmem [resolvable:$true] %s74
      %77 = dma.hbm_to_vmem [thread:$0]  %s73, 64, %s75, [#allocation11]
    $region21: #{tpu_custom_call.1} parent=1 // pred_fallthru
      _
    // Predicated region
    $region22: #{tpu_custom_call.1} parent=1 // pred_check
      _
    $region23: #{tpu_custom_call.1} parent=1 // pred_check_branch
      %79 = sbr.rel (0) target = $region25
    $region24: #{tpu_custom_call.1} parent=1 // pred_region
      %81 = vsyncadd [#allocation14], 0
      %s82 = sshll.u32 %s5, 4
      %s83 = int_to_ptr.hbm [resolvable:$true] %s82
      %s84 = sshll.u32 [#allocation13], 4
      %s85 = int_to_ptr.vmem [resolvable:$true] %s84
      %90 = dma.hbm_to_vmem [thread:$0]  %s83, 4096, %s85, [#allocation14], 256, 256, 16
    $region25: #{tpu_custom_call.1} parent=1 // pred_fallthru
      _
    // Predicated region
    $region26: #{tpu_custom_call.1} parent=1 // pred_check
      _
    $region27: #{tpu_custom_call.1} parent=1 // pred_check_branch
      %92 = sbr.rel (0) target = $region29
    $region28: #{tpu_custom_call.1} parent=1 // pred_region
      %94 = vsyncadd [#allocation14], 0
      %s95 = sshll.u32 %s6, 4
      %s96 = int_to_ptr.hbm [resolvable:$true] %s95
      %s97 = sshll.u32 [#allocation15], 4
      %s98 = int_to_ptr.vmem [resolvable:$true] %s97
      %103 = dma.hbm_to_vmem [thread:$0]  %s96, 4096, %s98, [#allocation14], 256, 256, 16
    $region29: #{tpu_custom_call.1} parent=1 // pred_fallthru
      _
    // Predicated region
    $region30: #{tpu_custom_call.1} parent=1 // pred_check
      _
    $region31: #{tpu_custom_call.1} parent=1 // pred_check_branch
      %105 = sbr.rel (0) target = $region33
    $region32: #{tpu_custom_call.1} parent=1 // pred_region
      %107 = dma.done [#allocation5], 2304
    $region33: #{tpu_custom_call.1} parent=1 // pred_fallthru
      _
    // Predicated region
    $region34: #{tpu_custom_call.1} parent=1 // pred_check
      _
    $region35: #{tpu_custom_call.1} parent=1 // pred_check_branch
      %109 = sbr.rel (0) target = $region37
    $region36: #{tpu_custom_call.1} parent=1 // pred_region
      %111 = dma.done [#allocation8], 2048
    $region37: #{tpu_custom_call.1} parent=1 // pred_fallthru
      _
    // Predicated region
    $region38: #{tpu_custom_call.1} parent=1 // pred_check
      _
    $region39: #{tpu_custom_call.1} parent=1 // pred_check_branch
      %113 = sbr.rel (0) target = $region41
    $region40: #{tpu_custom_call.1} parent=1 // pred_region
      %115 = dma.done [#allocation8], 2048
    $region41: #{tpu_custom_call.1} parent=1 // pred_fallthru
      _
    // Predicated region
    $region42: #{tpu_custom_call.1} parent=1 // pred_check
      _
    $region43: #{tpu_custom_call.1} parent=1 // pred_check_branch
      %117 = sbr.rel (0) target = $region45
    $region44: #{tpu_custom_call.1} parent=1 // pred_region
      %119 = dma.done [#allocation11], 64
    $region45: #{tpu_custom_call.1} parent=1 // pred_fallthru
      _
    // Predicated region
    $region46: #{tpu_custom_call.1} parent=1 // pred_check
      _
    $region47: #{tpu_custom_call.1} parent=1 // pred_check_branch
      %121 = sbr.rel (0) target = $region49
    $region48: #{tpu_custom_call.1} parent=1 // pred_region
      %123 = dma.done [#allocation11], 64
    $region49: #{tpu_custom_call.1} parent=1 // pred_fallthru
      _
    // Predicated region
    $region50: #{tpu_custom_call.1} parent=1 // pred_check
      _
    $region51: #{tpu_custom_call.1} parent=1 // pred_check_branch
      %125 = sbr.rel (0) target = $region53
    $region52: #{tpu_custom_call.1} parent=1 // pred_region
      %127 = dma.done [#allocation14], 4096
    $region53: #{tpu_custom_call.1} parent=1 // pred_fallthru
      _
    // Predicated region
    $region54: #{tpu_custom_call.1} parent=1 // pred_check
      _
    $region55: #{tpu_custom_call.1} parent=1 // pred_check_branch
      %129 = sbr.rel (0) target = $region57
    $region56: #{tpu_custom_call.1} parent=1 // pred_region
      %131 = dma.done [#allocation14], 4096
    $region57: #{tpu_custom_call.1} parent=1 // pred_fallthru
      _
    %v133 = vld [vmem:[#allocation4] sm:$0xf]
    %v134 = vld [vmem:[#allocation4 + $0x4] sm:$0xf]
    %v135 = vld [vmem:[#allocation4 + $0x8] sm:$0xf]
    %v136 = vld [vmem:[#allocation4 + $0xc] sm:$0xf]
    %v137 = vld [vmem:[#allocation4 + $0x10] sm:$0xf]
    %v138 = vld [vmem:[#allocation4 + $0x14] sm:$0xf]
    %v139 = vld [vmem:[#allocation4 + $0x18] sm:$0xf]
    %v140 = vld [vmem:[#allocation4 + $0x1c] sm:$0xf]
    %v141 = vld [vmem:[#allocation4 + $0x20] sm:$0xf]
    %v142 = vld [vmem:[#allocation4 + $0x24] sm:$0xf]
    %v143 = vld [vmem:[#allocation4 + $0x28] sm:$0xf]
    %v144 = vld [vmem:[#allocation4 + $0x2c] sm:$0xf]
    %v145 = vld [vmem:[#allocation4 + $0x30] sm:$0xf]
    %v146 = vld [vmem:[#allocation4 + $0x34] sm:$0xf]
    %v147 = vld [vmem:[#allocation4 + $0x38] sm:$0xf]
    %v148 = vld [vmem:[#allocation4 + $0x3c] sm:$0xf]
    %v149 = vld [vmem:[#allocation4 + $0x40] sm:$0xf]
    %v150 = vld [vmem:[#allocation4 + $0x44] sm:$0xf]
    %v151 = vld [vmem:[#allocation4 + $0x48] sm:$0xf]
    %v152 = vld [vmem:[#allocation4 + $0x4c] sm:$0xf]
    %v153 = vld [vmem:[#allocation4 + $0x50] sm:$0xf]
    %v154 = vld [vmem:[#allocation4 + $0x54] sm:$0xf]
    %v155 = vld [vmem:[#allocation4 + $0x58] sm:$0xf]
    %v156 = vld [vmem:[#allocation4 + $0x5c] sm:$0xf]
    %v157 = vld [vmem:[#allocation4 + $0x60] sm:$0xf]
    %v158 = vld [vmem:[#allocation4 + $0x64] sm:$0xf]
    %v159 = vld [vmem:[#allocation4 + $0x68] sm:$0xf]
    %v160 = vld [vmem:[#allocation4 + $0x6c] sm:$0xf]
    %v161 = vld [vmem:[#allocation4 + $0x70] sm:$0xf]
    %v162 = vld [vmem:[#allocation4 + $0x74] sm:$0xf]
    %v163 = vld [vmem:[#allocation4 + $0x78] sm:$0xf]
    %v164 = vld [vmem:[#allocation4 + $0x7c] sm:$0xf]
    %v165 = vld [vmem:[#allocation4 + $0x80] sm:$0xf]
    %v166 = vld [vmem:[#allocation7] sm:$0xff]
    %v167 = vld [vmem:[#allocation7 + $0x8] sm:$0xff]
    %v168 = vld [vmem:[#allocation7 + $0x10] sm:$0xff]
    %v169 = vld [vmem:[#allocation7 + $0x18] sm:$0xff]
    %v170 = vld [vmem:[#allocation7 + $0x20] sm:$0xff]
    %v171 = vld [vmem:[#allocation7 + $0x28] sm:$0xff]
    %v172 = vld [vmem:[#allocation7 + $0x30] sm:$0xff]
    %v173 = vld [vmem:[#allocation7 + $0x38] sm:$0xff]
    %v174 = vld [vmem:[#allocation7 + $0x40] sm:$0xff]
    %v175 = vld [vmem:[#allocation7 + $0x48] sm:$0xff]
    %v176 = vld [vmem:[#allocation7 + $0x50] sm:$0xff]
    %v177 = vld [vmem:[#allocation7 + $0x58] sm:$0xff]
    %v178 = vld [vmem:[#allocation7 + $0x60] sm:$0xff]
    %v179 = vld [vmem:[#allocation7 + $0x68] sm:$0xff]
    %v180 = vld [vmem:[#allocation7 + $0x70] sm:$0xff]
    %v181 = vld [vmem:[#allocation7 + $0x78] sm:$0xff]
    %v182 = vld [vmem:[#allocation10] sm:$0xf]
    %v184 = vperm.slane %v182, 0
    %v185 = vperm.slane %v182, 1
    %v186 = vperm.slane %v182, 2
    %v187 = vperm.slane %v182, 3
    %v225 = vunpack.c.l.b16 %v133
    %v226 = vunpack.c.l.b16 %v134
    %v227 = vunpack.c.l.b16 %v135
    %v228 = vunpack.c.l.b16 %v136
    %v229 = vunpack.c.l.b16 %v137
    %v230 = vunpack.c.l.b16 %v138
    %v231 = vunpack.c.l.b16 %v139
    %v232 = vunpack.c.l.b16 %v140
    %v233 = vunpack.c.l.b16 %v141
    %v234 = vunpack.c.l.b16 %v142
    %v235 = vunpack.c.l.b16 %v143
    %v236 = vunpack.c.l.b16 %v144
    %v237 = vunpack.c.l.b16 %v145
    %v238 = vunpack.c.l.b16 %v146
    %v239 = vunpack.c.l.b16 %v147
    %v240 = vunpack.c.l.b16 %v148
    %v241 = vunpack.c.l.b16 %v149
    %v242 = vunpack.c.l.b16 %v150
    %v243 = vunpack.c.l.b16 %v151
    %v244 = vunpack.c.l.b16 %v152
    %v245 = vunpack.c.l.b16 %v153
    %v246 = vunpack.c.l.b16 %v154
    %v247 = vunpack.c.l.b16 %v155
    %v248 = vunpack.c.l.b16 %v156
    %v249 = vunpack.c.l.b16 %v157
    %v250 = vunpack.c.l.b16 %v158
    %v251 = vunpack.c.l.b16 %v159
    %v252 = vunpack.c.l.b16 %v160
    %v253 = vunpack.c.l.b16 %v161
    %v254 = vunpack.c.l.b16 %v162
    %v255 = vunpack.c.l.b16 %v163
    %v256 = vunpack.c.l.b16 %v164
    %v257 = vunpack.c.l.b16 %v165
    %v258 = vpack.c.b16 %v226, %v225
    %v259 = vpack.c.b16 %v228, %v227
    %v260 = vpack.c.b16 %v230, %v229
    %v261 = vpack.c.b16 %v232, %v231
    %v262 = vpack.c.b16 %v234, %v233
    %v263 = vpack.c.b16 %v236, %v235
    %v264 = vpack.c.b16 %v238, %v237
    %v265 = vpack.c.b16 %v240, %v239
    %v266 = vpack.c.b16 %v242, %v241
    %v267 = vpack.c.b16 %v244, %v243
    %v268 = vpack.c.b16 %v246, %v245
    %v269 = vpack.c.b16 %v248, %v247
    %v270 = vpack.c.b16 %v250, %v249
    %v271 = vpack.c.b16 %v252, %v251
    %v272 = vpack.c.b16 %v254, %v253
    %v273 = vpack.c.b16 %v256, %v255
    %v274 = vpack.c.b16 %v257, %v257
    %v291 = vunpack.c.l.b16 %v166
    %v292 = vunpack.c.h.b16 %v166
    %v293 = vunpack.c.l.b16 %v167
    %v294 = vunpack.c.h.b16 %v167
    %v295 = vunpack.c.l.b16 %v168
    %v296 = vunpack.c.h.b16 %v168
    %v297 = vunpack.c.l.b16 %v169
    %v298 = vunpack.c.h.b16 %v169
    %v299 = vunpack.c.l.b16 %v170
    %v300 = vunpack.c.h.b16 %v170
    %v301 = vunpack.c.l.b16 %v171
    %v302 = vunpack.c.h.b16 %v171
    %v303 = vunpack.c.l.b16 %v172
    %v304 = vunpack.c.h.b16 %v172
    %v305 = vunpack.c.l.b16 %v173
    %v306 = vunpack.c.h.b16 %v173
    %v307 = vunpack.c.l.b16 %v174
    %v308 = vunpack.c.h.b16 %v174
    %v309 = vunpack.c.l.b16 %v175
    %v310 = vunpack.c.h.b16 %v175
    %v311 = vunpack.c.l.b16 %v176
    %v312 = vunpack.c.h.b16 %v176
    %v313 = vunpack.c.l.b16 %v177
    %v314 = vunpack.c.h.b16 %v177
    %v315 = vunpack.c.l.b16 %v178
    %v316 = vunpack.c.h.b16 %v178
    %v317 = vunpack.c.l.b16 %v179
    %v318 = vunpack.c.h.b16 %v179
    %v319 = vunpack.c.l.b16 %v180
    %v320 = vunpack.c.h.b16 %v180
    %v321 = vunpack.c.l.b16 %v181
    %v322 = vunpack.c.h.b16 %v181
    %v323 = vpack.c.b16 %v295, %v291
    %v324 = vpack.c.b16 %v296, %v292
    %v325 = vpack.c.b16 %v297, %v293
    %v326 = vpack.c.b16 %v298, %v294
    %v327 = vpack.c.b16 %v303, %v299
    %v328 = vpack.c.b16 %v304, %v300
    %v329 = vpack.c.b16 %v305, %v301
    %v330 = vpack.c.b16 %v306, %v302
    %v331 = vpack.c.b16 %v311, %v307
    %v332 = vpack.c.b16 %v312, %v308
    %v333 = vpack.c.b16 %v313, %v309
    %v334 = vpack.c.b16 %v314, %v310
    %v335 = vpack.c.b16 %v319, %v315
    %v336 = vpack.c.b16 %v320, %v316
    %v337 = vpack.c.b16 %v321, %v317
    %v338 = vpack.c.b16 %v322, %v318
    %vm355 = vcmask 523264
    %v357 = vsel %vm355, %v258, 0
    %v360 = vsel %vm355, %v259, 0
    %v363 = vsel %vm355, %v260, 0
    %v366 = vsel %vm355, %v261, 0
    %v369 = vsel %vm355, %v262, 0
    %v372 = vsel %vm355, %v263, 0
    %v375 = vsel %vm355, %v264, 0
    %v378 = vsel %vm355, %v265, 0
    %v381 = vsel %vm355, %v266, 0
    %v384 = vsel %vm355, %v267, 0
    %v387 = vsel %vm355, %v268, 0
    %v390 = vsel %vm355, %v269, 0
    %v393 = vsel %vm355, %v270, 0
    %v396 = vsel %vm355, %v271, 0
    %v399 = vsel %vm355, %v272, 0
    %v402 = vsel %vm355, %v273, 0
    %v405 = vsel %vm355, %v274, 0
    %407 = vmatpush.bf16.msra.mxu0 0
    %408 = vmatpush.bf16.msra.mxu0 0
    %409 = vmatpush.bf16.msra.mxu0 0
    %410 = vmatpush.bf16.msra.mxu0 0
    %411 = vmatpush.bf16.msra.mxu0 %v335
    %412 = vmatpush.bf16.msra.mxu0 %v331
    %413 = vmatpush.bf16.msra.mxu0 %v327
    %414 = vmatpush.bf16.msra.mxu0 %v323
    %415 = vmatmul.bf16.gmra.mxu0 %v357
    %v416 = vpop.f32.mrf.mxu0
    %v417 = vadd.f32 %v184, %v416
    %v418 = vpop.f32.mrf.mxu0
    %v419 = vadd.f32 %v184, %v418
    %420 = vmatmul.bf16.gmra.mxu0 %v360
    %v421 = vpop.f32.mrf.mxu0
    %v422 = vadd.f32 %v184, %v421
    %v423 = vpop.f32.mrf.mxu0
    %v424 = vadd.f32 %v184, %v423
    %425 = vmatmul.bf16.gmra.mxu0 %v363
    %v426 = vpop.f32.mrf.mxu0
    %v427 = vadd.f32 %v184, %v426
    %v428 = vpop.f32.mrf.mxu0
    %v429 = vadd.f32 %v184, %v428
    %430 = vmatmul.bf16.gmra.mxu0 %v366
    %v431 = vpop.f32.mrf.mxu0
    %v432 = vadd.f32 %v184, %v431
    %v433 = vpop.f32.mrf.mxu0
    %v434 = vadd.f32 %v184, %v433
    %435 = vmatmul.bf16.gmra.mxu0 %v369
    %v436 = vpop.f32.mrf.mxu0
    %v437 = vadd.f32 %v184, %v436
    %v438 = vpop.f32.mrf.mxu0
    %v439 = vadd.f32 %v184, %v438
    %440 = vmatmul.bf16.gmra.mxu0 %v372
    %v441 = vpop.f32.mrf.mxu0
    %v442 = vadd.f32 %v184, %v441
    %v443 = vpop.f32.mrf.mxu0
    %v444 = vadd.f32 %v184, %v443
    %445 = vmatmul.bf16.gmra.mxu0 %v375
    %v446 = vpop.f32.mrf.mxu0
    %v447 = vadd.f32 %v184, %v446
    %v448 = vpop.f32.mrf.mxu0
    %v449 = vadd.f32 %v184, %v448
    %450 = vmatmul.bf16.gmra.mxu0 %v378
    %v451 = vpop.f32.mrf.mxu0
    %v452 = vadd.f32 %v184, %v451
    %v453 = vpop.f32.mrf.mxu0
    %v454 = vadd.f32 %v184, %v453
    %455 = vmatmul.bf16.gmra.mxu0 %v381
    %v456 = vpop.f32.mrf.mxu0
    %v457 = vadd.f32 %v184, %v456
    %v458 = vpop.f32.mrf.mxu0
    %v459 = vadd.f32 %v184, %v458
    %460 = vmatmul.bf16.gmra.mxu0 %v384
    %v461 = vpop.f32.mrf.mxu0
    %v462 = vadd.f32 %v184, %v461
    %v463 = vpop.f32.mrf.mxu0
    %v464 = vadd.f32 %v184, %v463
    %465 = vmatmul.bf16.gmra.mxu0 %v387
    %v466 = vpop.f32.mrf.mxu0
    %v467 = vadd.f32 %v184, %v466
    %v468 = vpop.f32.mrf.mxu0
    %v469 = vadd.f32 %v184, %v468
    %470 = vmatmul.bf16.gmra.mxu0 %v390
    %v471 = vpop.f32.mrf.mxu0
    %v472 = vadd.f32 %v184, %v471
    %v473 = vpop.f32.mrf.mxu0
    %v474 = vadd.f32 %v184, %v473
    %475 = vmatmul.bf16.gmra.mxu0 %v393
    %v476 = vpop.f32.mrf.mxu0
    %v477 = vadd.f32 %v184, %v476
    %v478 = vpop.f32.mrf.mxu0
    %v479 = vadd.f32 %v184, %v478
    %480 = vmatmul.bf16.gmra.mxu0 %v396
    %v481 = vpop.f32.mrf.mxu0
    %v482 = vadd.f32 %v184, %v481
    %v483 = vpop.f32.mrf.mxu0
    %v484 = vadd.f32 %v184, %v483
    %485 = vmatmul.bf16.gmra.mxu0 %v399
    %v486 = vpop.f32.mrf.mxu0
    %v487 = vadd.f32 %v184, %v486
    %v488 = vpop.f32.mrf.mxu0
    %v489 = vadd.f32 %v184, %v488
    %490 = vmatmul.bf16.gmra.mxu0 %v402
    %v491 = vpop.f32.mrf.mxu0
    %v492 = vadd.f32 %v184, %v491
    %v493 = vpop.f32.mrf.mxu0
    %v494 = vadd.f32 %v184, %v493
    %495 = vmatmul.bf16.gmra.mxu0 %v405
    %v496 = vpop.f32.mrf.mxu0
    %v497 = vadd.f32 %v184, %v496
    %v498 = vpop.f32.mrf.mxu0
    %499 = vdwg.mxu0
    %500 = vmatpush.bf16.msra.mxu0 0
    %501 = vmatpush.bf16.msra.mxu0 0
    %502 = vmatpush.bf16.msra.mxu0 0
    %503 = vmatpush.bf16.msra.mxu0 0
    %504 = vmatpush.bf16.msra.mxu0 %v336
    %505 = vmatpush.bf16.msra.mxu0 %v332
    %506 = vmatpush.bf16.msra.mxu0 %v328
    %507 = vmatpush.bf16.msra.mxu0 %v324
    %508 = vmatmul.bf16.gmra.mxu0 %v357
    %v509 = vpop.f32.mrf.mxu0
    %v510 = vadd.f32 %v185, %v509
    %v511 = vpop.f32.mrf.mxu0
    %v512 = vadd.f32 %v185, %v511
    %513 = vmatmul.bf16.gmra.mxu0 %v360
    %v514 = vpop.f32.mrf.mxu0
    %v515 = vadd.f32 %v185, %v514
    %v516 = vpop.f32.mrf.mxu0
    %v517 = vadd.f32 %v185, %v516
    %518 = vmatmul.bf16.gmra.mxu0 %v363
    %v519 = vpop.f32.mrf.mxu0
    %v520 = vadd.f32 %v185, %v519
    %v521 = vpop.f32.mrf.mxu0
    %v522 = vadd.f32 %v185, %v521
    %523 = vmatmul.bf16.gmra.mxu0 %v366
    %v524 = vpop.f32.mrf.mxu0
    %v525 = vadd.f32 %v185, %v524
    %v526 = vpop.f32.mrf.mxu0
    %v527 = vadd.f32 %v185, %v526
    %528 = vmatmul.bf16.gmra.mxu0 %v369
    %v529 = vpop.f32.mrf.mxu0
    %v530 = vadd.f32 %v185, %v529
    %v531 = vpop.f32.mrf.mxu0
    %v532 = vadd.f32 %v185, %v531
    %533 = vmatmul.bf16.gmra.mxu0 %v372
    %v534 = vpop.f32.mrf.mxu0
    %v535 = vadd.f32 %v185, %v534
    %v536 = vpop.f32.mrf.mxu0
    %v537 = vadd.f32 %v185, %v536
    %538 = vmatmul.bf16.gmra.mxu0 %v375
    %v539 = vpop.f32.mrf.mxu0
    %v540 = vadd.f32 %v185, %v539
    %v541 = vpop.f32.mrf.mxu0
    %v542 = vadd.f32 %v185, %v541
    %543 = vmatmul.bf16.gmra.mxu0 %v378
    %v544 = vpop.f32.mrf.mxu0
    %v545 = vadd.f32 %v185, %v544
    %v546 = vpop.f32.mrf.mxu0
    %v547 = vadd.f32 %v185, %v546
    %548 = vmatmul.bf16.gmra.mxu0 %v381
    %v549 = vpop.f32.mrf.mxu0
    %v550 = vadd.f32 %v185, %v549
    %v551 = vpop.f32.mrf.mxu0
    %v552 = vadd.f32 %v185, %v551
    %553 = vmatmul.bf16.gmra.mxu0 %v384
    %v554 = vpop.f32.mrf.mxu0
    %v555 = vadd.f32 %v185, %v554
    %v556 = vpop.f32.mrf.mxu0
    %v557 = vadd.f32 %v185, %v556
    %558 = vmatmul.bf16.gmra.mxu0 %v387
    %v559 = vpop.f32.mrf.mxu0
    %v560 = vadd.f32 %v185, %v559
    %v561 = vpop.f32.mrf.mxu0
    %v562 = vadd.f32 %v185, %v561
    %563 = vmatmul.bf16.gmra.mxu0 %v390
    %v564 = vpop.f32.mrf.mxu0
    %v565 = vadd.f32 %v185, %v564
    %v566 = vpop.f32.mrf.mxu0
    %v567 = vadd.f32 %v185, %v566
    %568 = vmatmul.bf16.gmra.mxu0 %v393
    %v569 = vpop.f32.mrf.mxu0
    %v570 = vadd.f32 %v185, %v569
    %v571 = vpop.f32.mrf.mxu0
    %v572 = vadd.f32 %v185, %v571
    %573 = vmatmul.bf16.gmra.mxu0 %v396
    %v574 = vpop.f32.mrf.mxu0
    %v575 = vadd.f32 %v185, %v574
    %v576 = vpop.f32.mrf.mxu0
    %v577 = vadd.f32 %v185, %v576
    %578 = vmatmul.bf16.gmra.mxu0 %v399
    %v579 = vpop.f32.mrf.mxu0
    %v580 = vadd.f32 %v185, %v579
    %v581 = vpop.f32.mrf.mxu0
    %v582 = vadd.f32 %v185, %v581
    %583 = vmatmul.bf16.gmra.mxu0 %v402
    %v584 = vpop.f32.mrf.mxu0
    %v585 = vadd.f32 %v185, %v584
    %v586 = vpop.f32.mrf.mxu0
    %v587 = vadd.f32 %v185, %v586
    %588 = vmatmul.bf16.gmra.mxu0 %v405
    %v589 = vpop.f32.mrf.mxu0
    %v590 = vadd.f32 %v185, %v589
    %v591 = vpop.f32.mrf.mxu0
    %592 = vdwg.mxu0
    %593 = vmatpush.bf16.msra.mxu0 0
    %594 = vmatpush.bf16.msra.mxu0 0
    %595 = vmatpush.bf16.msra.mxu0 0
    %596 = vmatpush.bf16.msra.mxu0 0
    %597 = vmatpush.bf16.msra.mxu0 %v337
    %598 = vmatpush.bf16.msra.mxu0 %v333
    %599 = vmatpush.bf16.msra.mxu0 %v329
    %600 = vmatpush.bf16.msra.mxu0 %v325
    %601 = vmatmul.bf16.gmra.mxu0 %v357
    %v602 = vpop.f32.mrf.mxu0
    %v603 = vadd.f32 %v186, %v602
    %v604 = vpop.f32.mrf.mxu0
    %v605 = vadd.f32 %v186, %v604
    %606 = vmatmul.bf16.gmra.mxu0 %v360
    %v607 = vpop.f32.mrf.mxu0
    %v608 = vadd.f32 %v186, %v607
    %v609 = vpop.f32.mrf.mxu0
    %v610 = vadd.f32 %v186, %v609
    %611 = vmatmul.bf16.gmra.mxu0 %v363
    %v612 = vpop.f32.mrf.mxu0
    %v613 = vadd.f32 %v186, %v612
    %v614 = vpop.f32.mrf.mxu0
    %v615 = vadd.f32 %v186, %v614
    %616 = vmatmul.bf16.gmra.mxu0 %v366
    %v617 = vpop.f32.mrf.mxu0
    %v618 = vadd.f32 %v186, %v617
    %v619 = vpop.f32.mrf.mxu0
    %v620 = vadd.f32 %v186, %v619
    %621 = vmatmul.bf16.gmra.mxu0 %v369
    %v622 = vpop.f32.mrf.mxu0
    %v623 = vadd.f32 %v186, %v622
    %v624 = vpop.f32.mrf.mxu0
    %v625 = vadd.f32 %v186, %v624
    %626 = vmatmul.bf16.gmra.mxu0 %v372
    %v627 = vpop.f32.mrf.mxu0
    %v628 = vadd.f32 %v186, %v627
    %v629 = vpop.f32.mrf.mxu0
    %v630 = vadd.f32 %v186, %v629
    %631 = vmatmul.bf16.gmra.mxu0 %v375
    %v632 = vpop.f32.mrf.mxu0
    %v633 = vadd.f32 %v186, %v632
    %v634 = vpop.f32.mrf.mxu0
    %v635 = vadd.f32 %v186, %v634
    %636 = vmatmul.bf16.gmra.mxu0 %v378
    %v637 = vpop.f32.mrf.mxu0
    %v638 = vadd.f32 %v186, %v637
    %v639 = vpop.f32.mrf.mxu0
    %v640 = vadd.f32 %v186, %v639
    %641 = vmatmul.bf16.gmra.mxu0 %v381
    %v642 = vpop.f32.mrf.mxu0
    %v643 = vadd.f32 %v186, %v642
    %v644 = vpop.f32.mrf.mxu0
    %v645 = vadd.f32 %v186, %v644
    %646 = vmatmul.bf16.gmra.mxu0 %v384
    %v647 = vpop.f32.mrf.mxu0
    %v648 = vadd.f32 %v186, %v647
    %v649 = vpop.f32.mrf.mxu0
    %v650 = vadd.f32 %v186, %v649
    %651 = vmatmul.bf16.gmra.mxu0 %v387
    %v652 = vpop.f32.mrf.mxu0
    %v653 = vadd.f32 %v186, %v652
    %v654 = vpop.f32.mrf.mxu0
    %v655 = vadd.f32 %v186, %v654
    %656 = vmatmul.bf16.gmra.mxu0 %v390
    %v657 = vpop.f32.mrf.mxu0
    %v658 = vadd.f32 %v186, %v657
    %v659 = vpop.f32.mrf.mxu0
    %v660 = vadd.f32 %v186, %v659
    %661 = vmatmul.bf16.gmra.mxu0 %v393
    %v662 = vpop.f32.mrf.mxu0
    %v663 = vadd.f32 %v186, %v662
    %v664 = vpop.f32.mrf.mxu0
    %v665 = vadd.f32 %v186, %v664
    %666 = vmatmul.bf16.gmra.mxu0 %v396
    %v667 = vpop.f32.mrf.mxu0
    %v668 = vadd.f32 %v186, %v667
    %v669 = vpop.f32.mrf.mxu0
    %v670 = vadd.f32 %v186, %v669
    %671 = vmatmul.bf16.gmra.mxu0 %v399
    %v672 = vpop.f32.mrf.mxu0
    %v673 = vadd.f32 %v186, %v672
    %v674 = vpop.f32.mrf.mxu0
    %v675 = vadd.f32 %v186, %v674
    %676 = vmatmul.bf16.gmra.mxu0 %v402
    %v677 = vpop.f32.mrf.mxu0
    %v678 = vadd.f32 %v186, %v677
    %v679 = vpop.f32.mrf.mxu0
    %v680 = vadd.f32 %v186, %v679
    %681 = vmatmul.bf16.gmra.mxu0 %v405
    %v682 = vpop.f32.mrf.mxu0
    %v683 = vadd.f32 %v186, %v682
    %v684 = vpop.f32.mrf.mxu0
    %685 = vdwg.mxu0
    %686 = vmatpush.bf16.msra.mxu0 0
    %687 = vmatpush.bf16.msra.mxu0 0
    %688 = vmatpush.bf16.msra.mxu0 0
    %689 = vmatpush.bf16.msra.mxu0 0
    %690 = vmatpush.bf16.msra.mxu0 %v338
    %691 = vmatpush.bf16.msra.mxu0 %v334
    %692 = vmatpush.bf16.msra.mxu0 %v330
    %693 = vmatpush.bf16.msra.mxu0 %v326
    %694 = vmatmul.bf16.gmra.mxu0 %v357
    %v695 = vpop.f32.mrf.mxu0
    %v696 = vadd.f32 %v187, %v695
    %v697 = vpop.f32.mrf.mxu0
    %v698 = vadd.f32 %v187, %v697
    %699 = vmatmul.bf16.gmra.mxu0 %v360
    %v700 = vpop.f32.mrf.mxu0
    %v701 = vadd.f32 %v187, %v700
    %v702 = vpop.f32.mrf.mxu0
    %v703 = vadd.f32 %v187, %v702
    %704 = vmatmul.bf16.gmra.mxu0 %v363
    %v705 = vpop.f32.mrf.mxu0
    %v706 = vadd.f32 %v187, %v705
    %v707 = vpop.f32.mrf.mxu0
    %v708 = vadd.f32 %v187, %v707
    %709 = vmatmul.bf16.gmra.mxu0 %v366
    %v710 = vpop.f32.mrf.mxu0
    %v711 = vadd.f32 %v187, %v710
    %v712 = vpop.f32.mrf.mxu0
    %v713 = vadd.f32 %v187, %v712
    %714 = vmatmul.bf16.gmra.mxu0 %v369
    %v715 = vpop.f32.mrf.mxu0
    %v716 = vadd.f32 %v187, %v715
    %v717 = vpop.f32.mrf.mxu0
    %v718 = vadd.f32 %v187, %v717
    %719 = vmatmul.bf16.gmra.mxu0 %v372
    %v720 = vpop.f32.mrf.mxu0
    %v721 = vadd.f32 %v187, %v720
    %v722 = vpop.f32.mrf.mxu0
    %v723 = vadd.f32 %v187, %v722
    %724 = vmatmul.bf16.gmra.mxu0 %v375
    %v725 = vpop.f32.mrf.mxu0
    %v726 = vadd.f32 %v187, %v725
    %v727 = vpop.f32.mrf.mxu0
    %v728 = vadd.f32 %v187, %v727
    %729 = vmatmul.bf16.gmra.mxu0 %v378
    %v730 = vpop.f32.mrf.mxu0
    %v731 = vadd.f32 %v187, %v730
    %v732 = vpop.f32.mrf.mxu0
    %v733 = vadd.f32 %v187, %v732
    %734 = vmatmul.bf16.gmra.mxu0 %v381
    %v735 = vpop.f32.mrf.mxu0
    %v736 = vadd.f32 %v187, %v735
    %v737 = vpop.f32.mrf.mxu0
    %v738 = vadd.f32 %v187, %v737
    %739 = vmatmul.bf16.gmra.mxu0 %v384
    %v740 = vpop.f32.mrf.mxu0
    %v741 = vadd.f32 %v187, %v740
    %v742 = vpop.f32.mrf.mxu0
    %v743 = vadd.f32 %v187, %v742
    %744 = vmatmul.bf16.gmra.mxu0 %v387
    %v745 = vpop.f32.mrf.mxu0
    %v746 = vadd.f32 %v187, %v745
    %v747 = vpop.f32.mrf.mxu0
    %v748 = vadd.f32 %v187, %v747
    %749 = vmatmul.bf16.gmra.mxu0 %v390
    %v750 = vpop.f32.mrf.mxu0
    %v751 = vadd.f32 %v187, %v750
    %v752 = vpop.f32.mrf.mxu0
    %v753 = vadd.f32 %v187, %v752
    %754 = vmatmul.bf16.gmra.mxu0 %v393
    %v755 = vpop.f32.mrf.mxu0
    %v756 = vadd.f32 %v187, %v755
    %v757 = vpop.f32.mrf.mxu0
    %v758 = vadd.f32 %v187, %v757
    %759 = vmatmul.bf16.gmra.mxu0 %v396
    %v760 = vpop.f32.mrf.mxu0
    %v761 = vadd.f32 %v187, %v760
    %v762 = vpop.f32.mrf.mxu0
    %v763 = vadd.f32 %v187, %v762
    %764 = vmatmul.bf16.gmra.mxu0 %v399
    %v765 = vpop.f32.mrf.mxu0
    %v766 = vadd.f32 %v187, %v765
    %v767 = vpop.f32.mrf.mxu0
    %v768 = vadd.f32 %v187, %v767
    %769 = vmatmul.bf16.gmra.mxu0 %v402
    %v770 = vpop.f32.mrf.mxu0
    %v771 = vadd.f32 %v187, %v770
    %v772 = vpop.f32.mrf.mxu0
    %v773 = vadd.f32 %v187, %v772
    %774 = vmatmul.bf16.gmra.mxu0 %v405
    %v775 = vpop.f32.mrf.mxu0
    %v776 = vadd.f32 %v187, %v775
    %v777 = vpop.f32.mrf.mxu0
    %778 = vdwg.mxu0
    %v779 = vld [vmem:[#allocation9] sm:$0xff]
    %v780 = vld [vmem:[#allocation9 + $0x8] sm:$0xff]
    %v781 = vld [vmem:[#allocation9 + $0x10] sm:$0xff]
    %v782 = vld [vmem:[#allocation9 + $0x18] sm:$0xff]
    %v783 = vld [vmem:[#allocation9 + $0x20] sm:$0xff]
    %v784 = vld [vmem:[#allocation9 + $0x28] sm:$0xff]
    %v785 = vld [vmem:[#allocation9 + $0x30] sm:$0xff]
    %v786 = vld [vmem:[#allocation9 + $0x38] sm:$0xff]
    %v787 = vld [vmem:[#allocation9 + $0x40] sm:$0xff]
    %v788 = vld [vmem:[#allocation9 + $0x48] sm:$0xff]
    %v789 = vld [vmem:[#allocation9 + $0x50] sm:$0xff]
    %v790 = vld [vmem:[#allocation9 + $0x58] sm:$0xff]
    %v791 = vld [vmem:[#allocation9 + $0x60] sm:$0xff]
    %v792 = vld [vmem:[#allocation9 + $0x68] sm:$0xff]
    %v793 = vld [vmem:[#allocation9 + $0x70] sm:$0xff]
    %v794 = vld [vmem:[#allocation9 + $0x78] sm:$0xff]
    %v795 = vld [vmem:[#allocation12] sm:$0xf]
    %v797 = vperm.slane %v795, 0
    %v798 = vperm.slane %v795, 1
    %v799 = vperm.slane %v795, 2
    %v800 = vperm.slane %v795, 3
    %v821 = vunpack.c.l.b16 %v779
    %v822 = vunpack.c.h.b16 %v779
    %v823 = vunpack.c.l.b16 %v780
    %v824 = vunpack.c.h.b16 %v780
    %v825 = vunpack.c.l.b16 %v781
    %v826 = vunpack.c.h.b16 %v781
    %v827 = vunpack.c.l.b16 %v782
    %v828 = vunpack.c.h.b16 %v782
    %v829 = vunpack.c.l.b16 %v783
    %v830 = vunpack.c.h.b16 %v783
    %v831 = vunpack.c.l.b16 %v784
    %v832 = vunpack.c.h.b16 %v784
    %v833 = vunpack.c.l.b16 %v785
    %v834 = vunpack.c.h.b16 %v785
    %v835 = vunpack.c.l.b16 %v786
    %v836 = vunpack.c.h.b16 %v786
    %v837 = vunpack.c.l.b16 %v787
    %v838 = vunpack.c.h.b16 %v787
    %v839 = vunpack.c.l.b16 %v788
    %v840 = vunpack.c.h.b16 %v788
    %v841 = vunpack.c.l.b16 %v789
    %v842 = vunpack.c.h.b16 %v789
    %v843 = vunpack.c.l.b16 %v790
    %v844 = vunpack.c.h.b16 %v790
    %v845 = vunpack.c.l.b16 %v791
    %v846 = vunpack.c.h.b16 %v791
    %v847 = vunpack.c.l.b16 %v792
    %v848 = vunpack.c.h.b16 %v792
    %v849 = vunpack.c.l.b16 %v793
    %v850 = vunpack.c.h.b16 %v793
    %v851 = vunpack.c.l.b16 %v794
    %v852 = vunpack.c.h.b16 %v794
    %v853 = vpack.c.b16 %v825, %v821
    %v854 = vpack.c.b16 %v826, %v822
    %v855 = vpack.c.b16 %v827, %v823
    %v856 = vpack.c.b16 %v828, %v824
    %v857 = vpack.c.b16 %v833, %v829
    %v858 = vpack.c.b16 %v834, %v830
    %v859 = vpack.c.b16 %v835, %v831
    %v860 = vpack.c.b16 %v836, %v832
    %v861 = vpack.c.b16 %v841, %v837
    %v862 = vpack.c.b16 %v842, %v838
    %v863 = vpack.c.b16 %v843, %v839
    %v864 = vpack.c.b16 %v844, %v840
    %v865 = vpack.c.b16 %v849, %v845
    %v866 = vpack.c.b16 %v850, %v846
    %v867 = vpack.c.b16 %v851, %v847
    %v868 = vpack.c.b16 %v852, %v848
    %885 = vmatpush.bf16.msra.mxu0 0
    %886 = vmatpush.bf16.msra.mxu0 0
    %887 = vmatpush.bf16.msra.mxu0 0
    %888 = vmatpush.bf16.msra.mxu0 0
    %889 = vmatpush.bf16.msra.mxu0 %v865
    %890 = vmatpush.bf16.msra.mxu0 %v861
    %891 = vmatpush.bf16.msra.mxu0 %v857
    %892 = vmatpush.bf16.msra.mxu0 %v853
    %893 = vmatmul.bf16.gmra.mxu0 %v357
    %v894 = vpop.f32.mrf.mxu0
    %v895 = vadd.f32 %v797, %v894
    %v896 = vpop.f32.mrf.mxu0
    %v897 = vadd.f32 %v797, %v896
    %898 = vmatmul.bf16.gmra.mxu0 %v360
    %v899 = vpop.f32.mrf.mxu0
    %v900 = vadd.f32 %v797, %v899
    %v901 = vpop.f32.mrf.mxu0
    %v902 = vadd.f32 %v797, %v901
    %903 = vmatmul.bf16.gmra.mxu0 %v363
    %v904 = vpop.f32.mrf.mxu0
    %v905 = vadd.f32 %v797, %v904
    %v906 = vpop.f32.mrf.mxu0
    %v907 = vadd.f32 %v797, %v906
    %908 = vmatmul.bf16.gmra.mxu0 %v366
    %v909 = vpop.f32.mrf.mxu0
    %v910 = vadd.f32 %v797, %v909
    %v911 = vpop.f32.mrf.mxu0
    %v912 = vadd.f32 %v797, %v911
    %913 = vmatmul.bf16.gmra.mxu0 %v369
    %v914 = vpop.f32.mrf.mxu0
    %v915 = vadd.f32 %v797, %v914
    %v916 = vpop.f32.mrf.mxu0
    %v917 = vadd.f32 %v797, %v916
    %918 = vmatmul.bf16.gmra.mxu0 %v372
    %v919 = vpop.f32.mrf.mxu0
    %v920 = vadd.f32 %v797, %v919
    %v921 = vpop.f32.mrf.mxu0
    %v922 = vadd.f32 %v797, %v921
    %923 = vmatmul.bf16.gmra.mxu0 %v375
    %v924 = vpop.f32.mrf.mxu0
    %v925 = vadd.f32 %v797, %v924
    %v926 = vpop.f32.mrf.mxu0
    %v927 = vadd.f32 %v797, %v926
    %928 = vmatmul.bf16.gmra.mxu0 %v378
    %v929 = vpop.f32.mrf.mxu0
    %v930 = vadd.f32 %v797, %v929
    %v931 = vpop.f32.mrf.mxu0
    %v932 = vadd.f32 %v797, %v931
    %933 = vmatmul.bf16.gmra.mxu0 %v381
    %v934 = vpop.f32.mrf.mxu0
    %v935 = vadd.f32 %v797, %v934
    %v936 = vpop.f32.mrf.mxu0
    %v937 = vadd.f32 %v797, %v936
    %938 = vmatmul.bf16.gmra.mxu0 %v384
    %v939 = vpop.f32.mrf.mxu0
    %v940 = vadd.f32 %v797, %v939
    %v941 = vpop.f32.mrf.mxu0
    %v942 = vadd.f32 %v797, %v941
    %943 = vmatmul.bf16.gmra.mxu0 %v387
    %v944 = vpop.f32.mrf.mxu0
    %v945 = vadd.f32 %v797, %v944
    %v946 = vpop.f32.mrf.mxu0
    %v947 = vadd.f32 %v797, %v946
    %948 = vmatmul.bf16.gmra.mxu0 %v390
    %v949 = vpop.f32.mrf.mxu0
    %v950 = vadd.f32 %v797, %v949
    %v951 = vpop.f32.mrf.mxu0
    %v952 = vadd.f32 %v797, %v951
    %953 = vmatmul.bf16.gmra.mxu0 %v393
    %v954 = vpop.f32.mrf.mxu0
    %v955 = vadd.f32 %v797, %v954
    %v956 = vpop.f32.mrf.mxu0
    %v957 = vadd.f32 %v797, %v956
    %958 = vmatmul.bf16.gmra.mxu0 %v396
    %v959 = vpop.f32.mrf.mxu0
    %v960 = vadd.f32 %v797, %v959
    %v961 = vpop.f32.mrf.mxu0
    %v962 = vadd.f32 %v797, %v961
    %963 = vmatmul.bf16.gmra.mxu0 %v399
    %v964 = vpop.f32.mrf.mxu0
    %v965 = vadd.f32 %v797, %v964
    %v966 = vpop.f32.mrf.mxu0
    %v967 = vadd.f32 %v797, %v966
    %968 = vmatmul.bf16.gmra.mxu0 %v402
    %v969 = vpop.f32.mrf.mxu0
    %v970 = vadd.f32 %v797, %v969
    %v971 = vpop.f32.mrf.mxu0
    %v972 = vadd.f32 %v797, %v971
    %973 = vmatmul.bf16.gmra.mxu0 %v405
    %v974 = vpop.f32.mrf.mxu0
    %v975 = vadd.f32 %v797, %v974
    %v976 = vpop.f32.mrf.mxu0
    %977 = vdwg.mxu0
    %978 = vmatpush.bf16.msra.mxu0 0
    %979 = vmatpush.bf16.msra.mxu0 0
    %980 = vmatpush.bf16.msra.mxu0 0
    %981 = vmatpush.bf16.msra.mxu0 0
    %982 = vmatpush.bf16.msra.mxu0 %v866
    %983 = vmatpush.bf16.msra.mxu0 %v862
    %984 = vmatpush.bf16.msra.mxu0 %v858
    %985 = vmatpush.bf16.msra.mxu0 %v854
    %986 = vmatmul.bf16.gmra.mxu0 %v357
    %v987 = vpop.f32.mrf.mxu0
    %v988 = vadd.f32 %v798, %v987
    %v989 = vpop.f32.mrf.mxu0
    %v990 = vadd.f32 %v798, %v989
    %991 = vmatmul.bf16.gmra.mxu0 %v360
    %v992 = vpop.f32.mrf.mxu0
    %v993 = vadd.f32 %v798, %v992
    %v994 = vpop.f32.mrf.mxu0
    %v995 = vadd.f32 %v798, %v994
    %996 = vmatmul.bf16.gmra.mxu0 %v363
    %v997 = vpop.f32.mrf.mxu0
    %v998 = vadd.f32 %v798, %v997
    %v999 = vpop.f32.mrf.mxu0
    %v1000 = vadd.f32 %v798, %v999
    %1001 = vmatmul.bf16.gmra.mxu0 %v366
    %v1002 = vpop.f32.mrf.mxu0
    %v1003 = vadd.f32 %v798, %v1002
    %v1004 = vpop.f32.mrf.mxu0
    %v1005 = vadd.f32 %v798, %v1004
    %1006 = vmatmul.bf16.gmra.mxu0 %v369
    %v1007 = vpop.f32.mrf.mxu0
    %v1008 = vadd.f32 %v798, %v1007
    %v1009 = vpop.f32.mrf.mxu0
    %v1010 = vadd.f32 %v798, %v1009
    %1011 = vmatmul.bf16.gmra.mxu0 %v372
    %v1012 = vpop.f32.mrf.mxu0
    %v1013 = vadd.f32 %v798, %v1012
    %v1014 = vpop.f32.mrf.mxu0
    %v1015 = vadd.f32 %v798, %v1014
    %1016 = vmatmul.bf16.gmra.mxu0 %v375
    %v1017 = vpop.f32.mrf.mxu0
    %v1018 = vadd.f32 %v798, %v1017
    %v1019 = vpop.f32.mrf.mxu0
    %v1020 = vadd.f32 %v798, %v1019
    %1021 = vmatmul.bf16.gmra.mxu0 %v378
    %v1022 = vpop.f32.mrf.mxu0
    %v1023 = vadd.f32 %v798, %v1022
    %v1024 = vpop.f32.mrf.mxu0
    %v1025 = vadd.f32 %v798, %v1024
    %1026 = vmatmul.bf16.gmra.mxu0 %v381
    %v1027 = vpop.f32.mrf.mxu0
    %v1028 = vadd.f32 %v798, %v1027
    %v1029 = vpop.f32.mrf.mxu0
    %v1030 = vadd.f32 %v798, %v1029
    %1031 = vmatmul.bf16.gmra.mxu0 %v384
    %v1032 = vpop.f32.mrf.mxu0
    %v1033 = vadd.f32 %v798, %v1032
    %v1034 = vpop.f32.mrf.mxu0
    %v1035 = vadd.f32 %v798, %v1034
    %1036 = vmatmul.bf16.gmra.mxu0 %v387
    %v1037 = vpop.f32.mrf.mxu0
    %v1038 = vadd.f32 %v798, %v1037
    %v1039 = vpop.f32.mrf.mxu0
    %v1040 = vadd.f32 %v798, %v1039
    %1041 = vmatmul.bf16.gmra.mxu0 %v390
    %v1042 = vpop.f32.mrf.mxu0
    %v1043 = vadd.f32 %v798, %v1042
    %v1044 = vpop.f32.mrf.mxu0
    %v1045 = vadd.f32 %v798, %v1044
    %1046 = vmatmul.bf16.gmra.mxu0 %v393
    %v1047 = vpop.f32.mrf.mxu0
    %v1048 = vadd.f32 %v798, %v1047
    %v1049 = vpop.f32.mrf.mxu0
    %v1050 = vadd.f32 %v798, %v1049
    %1051 = vmatmul.bf16.gmra.mxu0 %v396
    %v1052 = vpop.f32.mrf.mxu0
    %v1053 = vadd.f32 %v798, %v1052
    %v1054 = vpop.f32.mrf.mxu0
    %v1055 = vadd.f32 %v798, %v1054
    %1056 = vmatmul.bf16.gmra.mxu0 %v399
    %v1057 = vpop.f32.mrf.mxu0
    %v1058 = vadd.f32 %v798, %v1057
    %v1059 = vpop.f32.mrf.mxu0
    %v1060 = vadd.f32 %v798, %v1059
    %1061 = vmatmul.bf16.gmra.mxu0 %v402
    %v1062 = vpop.f32.mrf.mxu0
    %v1063 = vadd.f32 %v798, %v1062
    %v1064 = vpop.f32.mrf.mxu0
    %v1065 = vadd.f32 %v798, %v1064
    %1066 = vmatmul.bf16.gmra.mxu0 %v405
    %v1067 = vpop.f32.mrf.mxu0
    %v1068 = vadd.f32 %v798, %v1067
    %v1069 = vpop.f32.mrf.mxu0
    %1070 = vdwg.mxu0
    %1071 = vmatpush.bf16.msra.mxu0 0
    %1072 = vmatpush.bf16.msra.mxu0 0
    %1073 = vmatpush.bf16.msra.mxu0 0
    %1074 = vmatpush.bf16.msra.mxu0 0
    %1075 = vmatpush.bf16.msra.mxu0 %v867
    %1076 = vmatpush.bf16.msra.mxu0 %v863
    %1077 = vmatpush.bf16.msra.mxu0 %v859
    %1078 = vmatpush.bf16.msra.mxu0 %v855
    %1079 = vmatmul.bf16.gmra.mxu0 %v357
    %v1080 = vpop.f32.mrf.mxu0
    %v1081 = vadd.f32 %v799, %v1080
    %v1082 = vpop.f32.mrf.mxu0
    %v1083 = vadd.f32 %v799, %v1082
    %1084 = vmatmul.bf16.gmra.mxu0 %v360
    %v1085 = vpop.f32.mrf.mxu0
    %v1086 = vadd.f32 %v799, %v1085
    %v1087 = vpop.f32.mrf.mxu0
    %v1088 = vadd.f32 %v799, %v1087
    %1089 = vmatmul.bf16.gmra.mxu0 %v363
    %v1090 = vpop.f32.mrf.mxu0
    %v1091 = vadd.f32 %v799, %v1090
    %v1092 = vpop.f32.mrf.mxu0
    %v1093 = vadd.f32 %v799, %v1092
    %1094 = vmatmul.bf16.gmra.mxu0 %v366
    %v1095 = vpop.f32.mrf.mxu0
    %v1096 = vadd.f32 %v799, %v1095
    %v1097 = vpop.f32.mrf.mxu0
    %v1098 = vadd.f32 %v799, %v1097
    %1099 = vmatmul.bf16.gmra.mxu0 %v369
    %v1100 = vpop.f32.mrf.mxu0
    %v1101 = vadd.f32 %v799, %v1100
    %v1102 = vpop.f32.mrf.mxu0
    %v1103 = vadd.f32 %v799, %v1102
    %1104 = vmatmul.bf16.gmra.mxu0 %v372
    %v1105 = vpop.f32.mrf.mxu0
    %v1106 = vadd.f32 %v799, %v1105
    %v1107 = vpop.f32.mrf.mxu0
    %v1108 = vadd.f32 %v799, %v1107
    %1109 = vmatmul.bf16.gmra.mxu0 %v375
    %v1110 = vpop.f32.mrf.mxu0
    %v1111 = vadd.f32 %v799, %v1110
    %v1112 = vpop.f32.mrf.mxu0
    %v1113 = vadd.f32 %v799, %v1112
    %1114 = vmatmul.bf16.gmra.mxu0 %v378
    %v1115 = vpop.f32.mrf.mxu0
    %v1116 = vadd.f32 %v799, %v1115
    %v1117 = vpop.f32.mrf.mxu0
    %v1118 = vadd.f32 %v799, %v1117
    %1119 = vmatmul.bf16.gmra.mxu0 %v381
    %v1120 = vpop.f32.mrf.mxu0
    %v1121 = vadd.f32 %v799, %v1120
    %v1122 = vpop.f32.mrf.mxu0
    %v1123 = vadd.f32 %v799, %v1122
    %1124 = vmatmul.bf16.gmra.mxu0 %v384
    %v1125 = vpop.f32.mrf.mxu0
    %v1126 = vadd.f32 %v799, %v1125
    %v1127 = vpop.f32.mrf.mxu0
    %v1128 = vadd.f32 %v799, %v1127
    %1129 = vmatmul.bf16.gmra.mxu0 %v387
    %v1130 = vpop.f32.mrf.mxu0
    %v1131 = vadd.f32 %v799, %v1130
    %v1132 = vpop.f32.mrf.mxu0
    %v1133 = vadd.f32 %v799, %v1132
    %1134 = vmatmul.bf16.gmra.mxu0 %v390
    %v1135 = vpop.f32.mrf.mxu0
    %v1136 = vadd.f32 %v799, %v1135
    %v1137 = vpop.f32.mrf.mxu0
    %v1138 = vadd.f32 %v799, %v1137
    %1139 = vmatmul.bf16.gmra.mxu0 %v393
    %v1140 = vpop.f32.mrf.mxu0
    %v1141 = vadd.f32 %v799, %v1140
    %v1142 = vpop.f32.mrf.mxu0
    %v1143 = vadd.f32 %v799, %v1142
    %1144 = vmatmul.bf16.gmra.mxu0 %v396
    %v1145 = vpop.f32.mrf.mxu0
    %v1146 = vadd.f32 %v799, %v1145
    %v1147 = vpop.f32.mrf.mxu0
    %v1148 = vadd.f32 %v799, %v1147
    %1149 = vmatmul.bf16.gmra.mxu0 %v399
    %v1150 = vpop.f32.mrf.mxu0
    %v1151 = vadd.f32 %v799, %v1150
    %v1152 = vpop.f32.mrf.mxu0
    %v1153 = vadd.f32 %v799, %v1152
    %1154 = vmatmul.bf16.gmra.mxu0 %v402
    %v1155 = vpop.f32.mrf.mxu0
    %v1156 = vadd.f32 %v799, %v1155
    %v1157 = vpop.f32.mrf.mxu0
    %v1158 = vadd.f32 %v799, %v1157
    %1159 = vmatmul.bf16.gmra.mxu0 %v405
    %v1160 = vpop.f32.mrf.mxu0
    %v1161 = vadd.f32 %v799, %v1160
    %v1162 = vpop.f32.mrf.mxu0
    %1163 = vdwg.mxu0
    %1164 = vmatpush.bf16.msra.mxu0 0
    %1165 = vmatpush.bf16.msra.mxu0 0
    %1166 = vmatpush.bf16.msra.mxu0 0
    %1167 = vmatpush.bf16.msra.mxu0 0
    %1168 = vmatpush.bf16.msra.mxu0 %v868
    %1169 = vmatpush.bf16.msra.mxu0 %v864
    %1170 = vmatpush.bf16.msra.mxu0 %v860
    %1171 = vmatpush.bf16.msra.mxu0 %v856
    %1172 = vmatmul.bf16.gmra.mxu0 %v357
    %v1173 = vpop.f32.mrf.mxu0
    %v1174 = vadd.f32 %v800, %v1173
    %v1175 = vpop.f32.mrf.mxu0
    %v1176 = vadd.f32 %v800, %v1175
    %1177 = vmatmul.bf16.gmra.mxu0 %v360
    %v1178 = vpop.f32.mrf.mxu0
    %v1179 = vadd.f32 %v800, %v1178
    %v1180 = vpop.f32.mrf.mxu0
    %v1181 = vadd.f32 %v800, %v1180
    %1182 = vmatmul.bf16.gmra.mxu0 %v363
    %v1183 = vpop.f32.mrf.mxu0
    %v1184 = vadd.f32 %v800, %v1183
    %v1185 = vpop.f32.mrf.mxu0
    %v1186 = vadd.f32 %v800, %v1185
    %1187 = vmatmul.bf16.gmra.mxu0 %v366
    %v1188 = vpop.f32.mrf.mxu0
    %v1189 = vadd.f32 %v800, %v1188
    %v1190 = vpop.f32.mrf.mxu0
    %v1191 = vadd.f32 %v800, %v1190
    %1192 = vmatmul.bf16.gmra.mxu0 %v369
    %v1193 = vpop.f32.mrf.mxu0
    %v1194 = vadd.f32 %v800, %v1193
    %v1195 = vpop.f32.mrf.mxu0
    %v1196 = vadd.f32 %v800, %v1195
    %1197 = vmatmul.bf16.gmra.mxu0 %v372
    %v1198 = vpop.f32.mrf.mxu0
    %v1199 = vadd.f32 %v800, %v1198
    %v1200 = vpop.f32.mrf.mxu0
    %v1201 = vadd.f32 %v800, %v1200
    %1202 = vmatmul.bf16.gmra.mxu0 %v375
    %v1203 = vpop.f32.mrf.mxu0
    %v1204 = vadd.f32 %v800, %v1203
    %v1205 = vpop.f32.mrf.mxu0
    %v1206 = vadd.f32 %v800, %v1205
    %1207 = vmatmul.bf16.gmra.mxu0 %v378
    %v1208 = vpop.f32.mrf.mxu0
    %v1209 = vadd.f32 %v800, %v1208
    %v1210 = vpop.f32.mrf.mxu0
    %v1211 = vadd.f32 %v800, %v1210
    %1212 = vmatmul.bf16.gmra.mxu0 %v381
    %v1213 = vpop.f32.mrf.mxu0
    %v1214 = vadd.f32 %v800, %v1213
    %v1215 = vpop.f32.mrf.mxu0
    %v1216 = vadd.f32 %v800, %v1215
    %1217 = vmatmul.bf16.gmra.mxu0 %v384
    %v1218 = vpop.f32.mrf.mxu0
    %v1219 = vadd.f32 %v800, %v1218
    %v1220 = vpop.f32.mrf.mxu0
    %v1221 = vadd.f32 %v800, %v1220
    %1222 = vmatmul.bf16.gmra.mxu0 %v387
    %v1223 = vpop.f32.mrf.mxu0
    %v1224 = vadd.f32 %v800, %v1223
    %v1225 = vpop.f32.mrf.mxu0
    %v1226 = vadd.f32 %v800, %v1225
    %1227 = vmatmul.bf16.gmra.mxu0 %v390
    %v1228 = vpop.f32.mrf.mxu0
    %v1229 = vadd.f32 %v800, %v1228
    %v1230 = vpop.f32.mrf.mxu0
    %v1231 = vadd.f32 %v800, %v1230
    %1232 = vmatmul.bf16.gmra.mxu0 %v393
    %v1233 = vpop.f32.mrf.mxu0
    %v1234 = vadd.f32 %v800, %v1233
    %v1235 = vpop.f32.mrf.mxu0
    %v1236 = vadd.f32 %v800, %v1235
    %1237 = vmatmul.bf16.gmra.mxu0 %v396
    %v1238 = vpop.f32.mrf.mxu0
    %v1239 = vadd.f32 %v800, %v1238
    %v1240 = vpop.f32.mrf.mxu0
    %v1241 = vadd.f32 %v800, %v1240
    %1242 = vmatmul.bf16.gmra.mxu0 %v399
    %v1243 = vpop.f32.mrf.mxu0
    %v1244 = vadd.f32 %v800, %v1243
    %v1245 = vpop.f32.mrf.mxu0
    %v1246 = vadd.f32 %v800, %v1245
    %1247 = vmatmul.bf16.gmra.mxu0 %v402
    %v1248 = vpop.f32.mrf.mxu0
    %v1249 = vadd.f32 %v800, %v1248
    %v1250 = vpop.f32.mrf.mxu0
    %v1251 = vadd.f32 %v800, %v1250
    %1252 = vmatmul.bf16.gmra.mxu0 %v405
    %v1253 = vpop.f32.mrf.mxu0
    %v1254 = vadd.f32 %v800, %v1253
    %v1255 = vpop.f32.mrf.mxu0
    %1256 = vdwg.mxu0
    %v1257 = vpack.c.bf16 %v510, %v417
    %v1258 = vpack.c.bf16 %v696, %v603
    %v1259 = vpack.c.bf16 %v512, %v419
    %v1260 = vpack.c.bf16 %v698, %v605
    %v1261 = vpack.c.bf16 %v515, %v422
    %v1262 = vpack.c.bf16 %v701, %v608
    %v1263 = vpack.c.bf16 %v517, %v424
    %v1264 = vpack.c.bf16 %v703, %v610
    %v1265 = vpack.c.bf16 %v520, %v427
    %v1266 = vpack.c.bf16 %v706, %v613
    %v1267 = vpack.c.bf16 %v522, %v429
    %v1268 = vpack.c.bf16 %v708, %v615
    %v1269 = vpack.c.bf16 %v525, %v432
    %v1270 = vpack.c.bf16 %v711, %v618
    %v1271 = vpack.c.bf16 %v527, %v434
    %v1272 = vpack.c.bf16 %v713, %v620
    %v1273 = vpack.c.bf16 %v530, %v437
    %v1274 = vpack.c.bf16 %v716, %v623
    %v1275 = vpack.c.bf16 %v532, %v439
    %v1276 = vpack.c.bf16 %v718, %v625
    %v1277 = vpack.c.bf16 %v535, %v442
    %v1278 = vpack.c.bf16 %v721, %v628
    %v1279 = vpack.c.bf16 %v537, %v444
    %v1280 = vpack.c.bf16 %v723, %v630
    %v1281 = vpack.c.bf16 %v540, %v447
    %v1282 = vpack.c.bf16 %v726, %v633
    %v1283 = vpack.c.bf16 %v542, %v449
    %v1284 = vpack.c.bf16 %v728, %v635
    %v1285 = vpack.c.bf16 %v545, %v452
    %v1286 = vpack.c.bf16 %v731, %v638
    %v1287 = vpack.c.bf16 %v547, %v454
    %v1288 = vpack.c.bf16 %v733, %v640
    %v1289 = vpack.c.bf16 %v550, %v457
    %v1290 = vpack.c.bf16 %v736, %v643
    %v1291 = vpack.c.bf16 %v552, %v459
    %v1292 = vpack.c.bf16 %v738, %v645
    %v1293 = vpack.c.bf16 %v555, %v462
    %v1294 = vpack.c.bf16 %v741, %v648
    %v1295 = vpack.c.bf16 %v557, %v464
    %v1296 = vpack.c.bf16 %v743, %v650
    %v1297 = vpack.c.bf16 %v560, %v467
    %v1298 = vpack.c.bf16 %v746, %v653
    %v1299 = vpack.c.bf16 %v562, %v469
    %v1300 = vpack.c.bf16 %v748, %v655
    %v1301 = vpack.c.bf16 %v565, %v472
    %v1302 = vpack.c.bf16 %v751, %v658
    %v1303 = vpack.c.bf16 %v567, %v474
    %v1304 = vpack.c.bf16 %v753, %v660
    %v1305 = vpack.c.bf16 %v570, %v477
    %v1306 = vpack.c.bf16 %v756, %v663
    %v1307 = vpack.c.bf16 %v572, %v479
    %v1308 = vpack.c.bf16 %v758, %v665
    %v1309 = vpack.c.bf16 %v575, %v482
    %v1310 = vpack.c.bf16 %v761, %v668
    %v1311 = vpack.c.bf16 %v577, %v484
    %v1312 = vpack.c.bf16 %v763, %v670
    %v1313 = vpack.c.bf16 %v580, %v487
    %v1314 = vpack.c.bf16 %v766, %v673
    %v1315 = vpack.c.bf16 %v582, %v489
    %v1316 = vpack.c.bf16 %v768, %v675
    %v1317 = vpack.c.bf16 %v585, %v492
    %v1318 = vpack.c.bf16 %v771, %v678
    %v1319 = vpack.c.bf16 %v587, %v494
    %v1320 = vpack.c.bf16 %v773, %v680
    %v1321 = vpack.c.bf16 %v590, %v497
    %v1322 = vpack.c.bf16 %v776, %v683
    %1323 = vst [vmem:[#allocation2] sm:$0xff] %v1257
    %1324 = vst [vmem:[#allocation2 + $0x8] sm:$0xff] %v1258
    %1325 = vst [vmem:[#allocation2 + $0x10] sm:$0xff] %v1259
    %1326 = vst [vmem:[#allocation2 + $0x18] sm:$0xff] %v1260
    %1327 = vst [vmem:[#allocation2 + $0x20] sm:$0xff] %v1261
    %1328 = vst [vmem:[#allocation2 + $0x28] sm:$0xff] %v1262
    %1329 = vst [vmem:[#allocation2 + $0x30] sm:$0xff] %v1263
    %1330 = vst [vmem:[#allocation2 + $0x38] sm:$0xff] %v1264
    %1331 = vst [vmem:[#allocation2 + $0x40] sm:$0xff] %v1265
    %1332 = vst [vmem:[#allocation2 + $0x48] sm:$0xff] %v1266
    %1333 = vst [vmem:[#allocation2 + $0x50] sm:$0xff] %v1267
    %1334 = vst [vmem:[#allocation2 + $0x58] sm:$0xff] %v1268
    %1335 = vst [vmem:[#allocation2 + $0x60] sm:$0xff] %v1269
    %1336 = vst [vmem:[#allocation2 + $0x68] sm:$0xff] %v1270
    %1337 = vst [vmem:[#allocation2 + $0x70] sm:$0xff] %v1271
    %1338 = vst [vmem:[#allocation2 + $0x78] sm:$0xff] %v1272
    %1339 = vst [vmem:[#allocation2 + $0x80] sm:$0xff] %v1273
    %1340 = vst [vmem:[#allocation2 + $0x88] sm:$0xff] %v1274
    %1341 = vst [vmem:[#allocation2 + $0x90] sm:$0xff] %v1275
    %1342 = vst [vmem:[#allocation2 + $0x98] sm:$0xff] %v1276
    %1343 = vst [vmem:[#allocation2 + $0xa0] sm:$0xff] %v1277
    %1344 = vst [vmem:[#allocation2 + $0xa8] sm:$0xff] %v1278
    %1345 = vst [vmem:[#allocation2 + $0xb0] sm:$0xff] %v1279
    %1346 = vst [vmem:[#allocation2 + $0xb8] sm:$0xff] %v1280
    %1347 = vst [vmem:[#allocation2 + $0xc0] sm:$0xff] %v1281
    %1348 = vst [vmem:[#allocation2 + $0xc8] sm:$0xff] %v1282
    %1349 = vst [vmem:[#allocation2 + $0xd0] sm:$0xff] %v1283
    %1350 = vst [vmem:[#allocation2 + $0xd8] sm:$0xff] %v1284
    %1351 = vst [vmem:[#allocation2 + $0xe0] sm:$0xff] %v1285
    %1352 = vst [vmem:[#allocation2 + $0xe8] sm:$0xff] %v1286
    %1353 = vst [vmem:[#allocation2 + $0xf0] sm:$0xff] %v1287
    %1354 = vst [vmem:[#allocation2 + $0xf8] sm:$0xff] %v1288
    %1355 = vst [vmem:[#allocation2 + $0x100] sm:$0xff] %v1289
    %1356 = vst [vmem:[#allocation2 + $0x108] sm:$0xff] %v1290
    %1357 = vst [vmem:[#allocation2 + $0x110] sm:$0xff] %v1291
    %1358 = vst [vmem:[#allocation2 + $0x118] sm:$0xff] %v1292
    %1359 = vst [vmem:[#allocation2 + $0x120] sm:$0xff] %v1293
    %1360 = vst [vmem:[#allocation2 + $0x128] sm:$0xff] %v1294
    %1361 = vst [vmem:[#allocation2 + $0x130] sm:$0xff] %v1295
    %1362 = vst [vmem:[#allocation2 + $0x138] sm:$0xff] %v1296
    %1363 = vst [vmem:[#allocation2 + $0x140] sm:$0xff] %v1297
    %1364 = vst [vmem:[#allocation2 + $0x148] sm:$0xff] %v1298
    %1365 = vst [vmem:[#allocation2 + $0x150] sm:$0xff] %v1299
    %1366 = vst [vmem:[#allocation2 + $0x158] sm:$0xff] %v1300
    %1367 = vst [vmem:[#allocation2 + $0x160] sm:$0xff] %v1301
    %1368 = vst [vmem:[#allocation2 + $0x168] sm:$0xff] %v1302
    %1369 = vst [vmem:[#allocation2 + $0x170] sm:$0xff] %v1303
    %1370 = vst [vmem:[#allocation2 + $0x178] sm:$0xff] %v1304
    %1371 = vst [vmem:[#allocation2 + $0x180] sm:$0xff] %v1305
    %1372 = vst [vmem:[#allocation2 + $0x188] sm:$0xff] %v1306
    %1373 = vst [vmem:[#allocation2 + $0x190] sm:$0xff] %v1307
    %1374 = vst [vmem:[#allocation2 + $0x198] sm:$0xff] %v1308
    %1375 = vst [vmem:[#allocation2 + $0x1a0] sm:$0xff] %v1309
    %1376 = vst [vmem:[#allocation2 + $0x1a8] sm:$0xff] %v1310
    %1377 = vst [vmem:[#allocation2 + $0x1b0] sm:$0xff] %v1311
    %1378 = vst [vmem:[#allocation2 + $0x1b8] sm:$0xff] %v1312
    %1379 = vst [vmem:[#allocation2 + $0x1c0] sm:$0xff] %v1313
    %1380 = vst [vmem:[#allocation2 + $0x1c8] sm:$0xff] %v1314
    %1381 = vst [vmem:[#allocation2 + $0x1d0] sm:$0xff] %v1315
    %1382 = vst [vmem:[#allocation2 + $0x1d8] sm:$0xff] %v1316
    %1383 = vst [vmem:[#allocation2 + $0x1e0] sm:$0xff] %v1317
    %1384 = vst [vmem:[#allocation2 + $0x1e8] sm:$0xff] %v1318
    %1385 = vst [vmem:[#allocation2 + $0x1f0] sm:$0xff] %v1319
    %1386 = vst [vmem:[#allocation2 + $0x1f8] sm:$0xff] %v1320
    %1387 = vst [vmem:[#allocation2 + $0x200] sm:$0xff] %v1321
    %1388 = vst [vmem:[#allocation2 + $0x208] sm:$0xff] %v1322
    %v1389 = vpack.c.bf16 %v988, %v895
    %v1390 = vpack.c.bf16 %v1174, %v1081
    %v1391 = vpack.c.bf16 %v990, %v897
    %v1392 = vpack.c.bf16 %v1176, %v1083
    %v1393 = vpack.c.bf16 %v993, %v900
    %v1394 = vpack.c.bf16 %v1179, %v1086
    %v1395 = vpack.c.bf16 %v995, %v902
    %v1396 = vpack.c.bf16 %v1181, %v1088
    %v1397 = vpack.c.bf16 %v998, %v905
    %v1398 = vpack.c.bf16 %v1184, %v1091
    %v1399 = vpack.c.bf16 %v1000, %v907
    %v1400 = vpack.c.bf16 %v1186, %v1093
    %v1401 = vpack.c.bf16 %v1003, %v910
    %v1402 = vpack.c.bf16 %v1189, %v1096
    %v1403 = vpack.c.bf16 %v1005, %v912
    %v1404 = vpack.c.bf16 %v1191, %v1098
    %v1405 = vpack.c.bf16 %v1008, %v915
    %v1406 = vpack.c.bf16 %v1194, %v1101
    %v1407 = vpack.c.bf16 %v1010, %v917
    %v1408 = vpack.c.bf16 %v1196, %v1103
    %v1409 = vpack.c.bf16 %v1013, %v920
    %v1410 = vpack.c.bf16 %v1199, %v1106
    %v1411 = vpack.c.bf16 %v1015, %v922
    %v1412 = vpack.c.bf16 %v1201, %v1108
    %v1413 = vpack.c.bf16 %v1018, %v925
    %v1414 = vpack.c.bf16 %v1204, %v1111
    %v1415 = vpack.c.bf16 %v1020, %v927
    %v1416 = vpack.c.bf16 %v1206, %v1113
    %v1417 = vpack.c.bf16 %v1023, %v930
    %v1418 = vpack.c.bf16 %v1209, %v1116
    %v1419 = vpack.c.bf16 %v1025, %v932
    %v1420 = vpack.c.bf16 %v1211, %v1118
    %v1421 = vpack.c.bf16 %v1028, %v935
    %v1422 = vpack.c.bf16 %v1214, %v1121
    %v1423 = vpack.c.bf16 %v1030, %v937
    %v1424 = vpack.c.bf16 %v1216, %v1123
    %v1425 = vpack.c.bf16 %v1033, %v940
    %v1426 = vpack.c.bf16 %v1219, %v1126
    %v1427 = vpack.c.bf16 %v1035, %v942
    %v1428 = vpack.c.bf16 %v1221, %v1128
    %v1429 = vpack.c.bf16 %v1038, %v945
    %v1430 = vpack.c.bf16 %v1224, %v1131
    %v1431 = vpack.c.bf16 %v1040, %v947
    %v1432 = vpack.c.bf16 %v1226, %v1133
    %v1433 = vpack.c.bf16 %v1043, %v950
    %v1434 = vpack.c.bf16 %v1229, %v1136
    %v1435 = vpack.c.bf16 %v1045, %v952
    %v1436 = vpack.c.bf16 %v1231, %v1138
    %v1437 = vpack.c.bf16 %v1048, %v955
    %v1438 = vpack.c.bf16 %v1234, %v1141
    %v1439 = vpack.c.bf16 %v1050, %v957
    %v1440 = vpack.c.bf16 %v1236, %v1143
    %v1441 = vpack.c.bf16 %v1053, %v960
    %v1442 = vpack.c.bf16 %v1239, %v1146
    %v1443 = vpack.c.bf16 %v1055, %v962
    %v1444 = vpack.c.bf16 %v1241, %v1148
    %v1445 = vpack.c.bf16 %v1058, %v965
    %v1446 = vpack.c.bf16 %v1244, %v1151
    %v1447 = vpack.c.bf16 %v1060, %v967
    %v1448 = vpack.c.bf16 %v1246, %v1153
    %v1449 = vpack.c.bf16 %v1063, %v970
    %v1450 = vpack.c.bf16 %v1249, %v1156
    %v1451 = vpack.c.bf16 %v1065, %v972
    %v1452 = vpack.c.bf16 %v1251, %v1158
    %v1453 = vpack.c.bf16 %v1068, %v975
    %v1454 = vpack.c.bf16 %v1254, %v1161
    %1455 = vst [vmem:[#allocation3] sm:$0xff] %v1389
    %1456 = vst [vmem:[#allocation3 + $0x8] sm:$0xff] %v1390
    %1457 = vst [vmem:[#allocation3 + $0x10] sm:$0xff] %v1391
    %1458 = vst [vmem:[#allocation3 + $0x18] sm:$0xff] %v1392
    %1459 = vst [vmem:[#allocation3 + $0x20] sm:$0xff] %v1393
    %1460 = vst [vmem:[#allocation3 + $0x28] sm:$0xff] %v1394
    %1461 = vst [vmem:[#allocation3 + $0x30] sm:$0xff] %v1395
    %1462 = vst [vmem:[#allocation3 + $0x38] sm:$0xff] %v1396
    %1463 = vst [vmem:[#allocation3 + $0x40] sm:$0xff] %v1397
    %1464 = vst [vmem:[#allocation3 + $0x48] sm:$0xff] %v1398
    %1465 = vst [vmem:[#allocation3 + $0x50] sm:$0xff] %v1399
    %1466 = vst [vmem:[#allocation3 + $0x58] sm:$0xff] %v1400
    %1467 = vst [vmem:[#allocation3 + $0x60] sm:$0xff] %v1401
    %1468 = vst [vmem:[#allocation3 + $0x68] sm:$0xff] %v1402
    %1469 = vst [vmem:[#allocation3 + $0x70] sm:$0xff] %v1403
    %1470 = vst [vmem:[#allocation3 + $0x78] sm:$0xff] %v1404
    %1471 = vst [vmem:[#allocation3 + $0x80] sm:$0xff] %v1405
    %1472 = vst [vmem:[#allocation3 + $0x88] sm:$0xff] %v1406
    %1473 = vst [vmem:[#allocation3 + $0x90] sm:$0xff] %v1407
    %1474 = vst [vmem:[#allocation3 + $0x98] sm:$0xff] %v1408
    %1475 = vst [vmem:[#allocation3 + $0xa0] sm:$0xff] %v1409
    %1476 = vst [vmem:[#allocation3 + $0xa8] sm:$0xff] %v1410
    %1477 = vst [vmem:[#allocation3 + $0xb0] sm:$0xff] %v1411
    %1478 = vst [vmem:[#allocation3 + $0xb8] sm:$0xff] %v1412
    %1479 = vst [vmem:[#allocation3 + $0xc0] sm:$0xff] %v1413
    %1480 = vst [vmem:[#allocation3 + $0xc8] sm:$0xff] %v1414
    %1481 = vst [vmem:[#allocation3 + $0xd0] sm:$0xff] %v1415
    %1482 = vst [vmem:[#allocation3 + $0xd8] sm:$0xff] %v1416
    %1483 = vst [vmem:[#allocation3 + $0xe0] sm:$0xff] %v1417
    %1484 = vst [vmem:[#allocation3 + $0xe8] sm:$0xff] %v1418
    %1485 = vst [vmem:[#allocation3 + $0xf0] sm:$0xff] %v1419
    %1486 = vst [vmem:[#allocation3 + $0xf8] sm:$0xff] %v1420
    %1487 = vst [vmem:[#allocation3 + $0x100] sm:$0xff] %v1421
    %1488 = vst [vmem:[#allocation3 + $0x108] sm:$0xff] %v1422
    %1489 = vst [vmem:[#allocation3 + $0x110] sm:$0xff] %v1423
    %1490 = vst [vmem:[#allocation3 + $0x118] sm:$0xff] %v1424
    %1491 = vst [vmem:[#allocation3 + $0x120] sm:$0xff] %v1425
    %1492 = vst [vmem:[#allocation3 + $0x128] sm:$0xff] %v1426
    %1493 = vst [vmem:[#allocation3 + $0x130] sm:$0xff] %v1427
    %1494 = vst [vmem:[#allocation3 + $0x138] sm:$0xff] %v1428
    %1495 = vst [vmem:[#allocation3 + $0x140] sm:$0xff] %v1429
    %1496 = vst [vmem:[#allocation3 + $0x148] sm:$0xff] %v1430
    %1497 = vst [vmem:[#allocation3 + $0x150] sm:$0xff] %v1431
    %1498 = vst [vmem:[#allocation3 + $0x158] sm:$0xff] %v1432
    %1499 = vst [vmem:[#allocation3 + $0x160] sm:$0xff] %v1433
    %1500 = vst [vmem:[#allocation3 + $0x168] sm:$0xff] %v1434
    %1501 = vst [vmem:[#allocation3 + $0x170] sm:$0xff] %v1435
    %1502 = vst [vmem:[#allocation3 + $0x178] sm:$0xff] %v1436
    %1503 = vst [vmem:[#allocation3 + $0x180] sm:$0xff] %v1437
    %1504 = vst [vmem:[#allocation3 + $0x188] sm:$0xff] %v1438
    %1505 = vst [vmem:[#allocation3 + $0x190] sm:$0xff] %v1439
    %1506 = vst [vmem:[#allocation3 + $0x198] sm:$0xff] %v1440
    %1507 = vst [vmem:[#allocation3 + $0x1a0] sm:$0xff] %v1441
    %1508 = vst [vmem:[#allocation3 + $0x1a8] sm:$0xff] %v1442
    %1509 = vst [vmem:[#allocation3 + $0x1b0] sm:$0xff] %v1443
    %1510 = vst [vmem:[#allocation3 + $0x1b8] sm:$0xff] %v1444
    %1511 = vst [vmem:[#allocation3 + $0x1c0] sm:$0xff] %v1445
    %1512 = vst [vmem:[#allocation3 + $0x1c8] sm:$0xff] %v1446
    %1513 = vst [vmem:[#allocation3 + $0x1d0] sm:$0xff] %v1447
    %1514 = vst [vmem:[#allocation3 + $0x1d8] sm:$0xff] %v1448
    %1515 = vst [vmem:[#allocation3 + $0x1e0] sm:$0xff] %v1449
    %1516 = vst [vmem:[#allocation3 + $0x1e8] sm:$0xff] %v1450
    %1517 = vst [vmem:[#allocation3 + $0x1f0] sm:$0xff] %v1451
    %1518 = vst [vmem:[#allocation3 + $0x1f8] sm:$0xff] %v1452
    %1519 = vst [vmem:[#allocation3 + $0x200] sm:$0xff] %v1453
    %1520 = vst [vmem:[#allocation3 + $0x208] sm:$0xff] %v1454
    %s1521 = scalar_lea.vmem [#allocation4], 132
    %v1522 = vld [vmem:[%s1521] sm:$0xf]
    %v1523 = vld [vmem:[%s1521 + $0x4] sm:$0xf]
    %v1524 = vld [vmem:[%s1521 + $0x8] sm:$0xf]
    %v1525 = vld [vmem:[#allocation7] sm:$0xff]
    %v1526 = vld [vmem:[#allocation7 + $0x8] sm:$0xff]
    %v1527 = vld [vmem:[#allocation7 + $0x10] sm:$0xff]
    %v1528 = vld [vmem:[#allocation7 + $0x18] sm:$0xff]
    %v1529 = vld [vmem:[#allocation7 + $0x20] sm:$0xff]
    %v1530 = vld [vmem:[#allocation7 + $0x28] sm:$0xff]
    %v1531 = vld [vmem:[#allocation7 + $0x30] sm:$0xff]
    %v1532 = vld [vmem:[#allocation7 + $0x38] sm:$0xff]
    %v1533 = vld [vmem:[#allocation7 + $0x40] sm:$0xff]
    %v1534 = vld [vmem:[#allocation7 + $0x48] sm:$0xff]
    %v1535 = vld [vmem:[#allocation7 + $0x50] sm:$0xff]
    %v1536 = vld [vmem:[#allocation7 + $0x58] sm:$0xff]
    %v1537 = vld [vmem:[#allocation7 + $0x60] sm:$0xff]
    %v1538 = vld [vmem:[#allocation7 + $0x68] sm:$0xff]
    %v1539 = vld [vmem:[#allocation7 + $0x70] sm:$0xff]
    %v1540 = vld [vmem:[#allocation7 + $0x78] sm:$0xff]
    %v1541 = vld [vmem:[#allocation10] sm:$0xf]
    %v1543 = vperm.slane %v1541, 0
    %v1544 = vperm.slane %v1541, 1
    %v1545 = vperm.slane %v1541, 2
    %v1546 = vperm.slane %v1541, 3
    %v1554 = vunpack.c.l.b16 %v1522
    %v1555 = vunpack.c.l.b16 %v1523
    %v1556 = vunpack.c.l.b16 %v1524
    %v1557 = vpack.c.b16 %v1555, %v1554
    %v1558 = vpack.c.b16 %v1556, %v1556
    %v1575 = vunpack.c.l.b16 %v1525
    %v1576 = vunpack.c.h.b16 %v1525
    %v1577 = vunpack.c.l.b16 %v1526
    %v1578 = vunpack.c.h.b16 %v1526
    %v1579 = vunpack.c.l.b16 %v1527
    %v1580 = vunpack.c.h.b16 %v1527
    %v1581 = vunpack.c.l.b16 %v1528
    %v1582 = vunpack.c.h.b16 %v1528
    %v1583 = vunpack.c.l.b16 %v1529
    %v1584 = vunpack.c.h.b16 %v1529
    %v1585 = vunpack.c.l.b16 %v1530
    %v1586 = vunpack.c.h.b16 %v1530
    %v1587 = vunpack.c.l.b16 %v1531
    %v1588 = vunpack.c.h.b16 %v1531
    %v1589 = vunpack.c.l.b16 %v1532
    %v1590 = vunpack.c.h.b16 %v1532
    %v1591 = vunpack.c.l.b16 %v1533
    %v1592 = vunpack.c.h.b16 %v1533
    %v1593 = vunpack.c.l.b16 %v1534
    %v1594 = vunpack.c.h.b16 %v1534
    %v1595 = vunpack.c.l.b16 %v1535
    %v1596 = vunpack.c.h.b16 %v1535
    %v1597 = vunpack.c.l.b16 %v1536
    %v1598 = vunpack.c.h.b16 %v1536
    %v1599 = vunpack.c.l.b16 %v1537
    %v1600 = vunpack.c.h.b16 %v1537
    %v1601 = vunpack.c.l.b16 %v1538
    %v1602 = vunpack.c.h.b16 %v1538
    %v1603 = vunpack.c.l.b16 %v1539
    %v1604 = vunpack.c.h.b16 %v1539
    %v1605 = vunpack.c.l.b16 %v1540
    %v1606 = vunpack.c.h.b16 %v1540
    %v1607 = vpack.c.b16 %v1579, %v1575
    %v1608 = vpack.c.b16 %v1580, %v1576
    %v1609 = vpack.c.b16 %v1581, %v1577
    %v1610 = vpack.c.b16 %v1582, %v1578
    %v1611 = vpack.c.b16 %v1587, %v1583
    %v1612 = vpack.c.b16 %v1588, %v1584
    %v1613 = vpack.c.b16 %v1589, %v1585
    %v1614 = vpack.c.b16 %v1590, %v1586
    %v1615 = vpack.c.b16 %v1595, %v1591
    %v1616 = vpack.c.b16 %v1596, %v1592
    %v1617 = vpack.c.b16 %v1597, %v1593
    %v1618 = vpack.c.b16 %v1598, %v1594
    %v1619 = vpack.c.b16 %v1603, %v1599
    %v1620 = vpack.c.b16 %v1604, %v1600
    %v1621 = vpack.c.b16 %v1605, %v1601
    %v1622 = vpack.c.b16 %v1606, %v1602
    %v1640 = vsel %vm355, %v1557, 0
    %v1643 = vsel %vm355, %v1558, 0
    %1645 = vmatpush.bf16.msra.mxu0 0
    %1646 = vmatpush.bf16.msra.mxu0 0
    %1647 = vmatpush.bf16.msra.mxu0 0
    %1648 = vmatpush.bf16.msra.mxu0 0
    %1649 = vmatpush.bf16.msra.mxu0 %v1619
    %1650 = vmatpush.bf16.msra.mxu0 %v1615
    %1651 = vmatpush.bf16.msra.mxu0 %v1611
    %1652 = vmatpush.bf16.msra.mxu0 %v1607
    %1653 = vmatmul.bf16.gmra.mxu0 %v1640
    %v1654 = vpop.f32.mrf.mxu0
    %v1655 = vadd.f32 %v1543, %v1654
    %v1656 = vpop.f32.mrf.mxu0
    %v1657 = vadd.f32 %v1543, %v1656
    %1658 = vmatmul.bf16.gmra.mxu0 %v1643
    %v1659 = vpop.f32.mrf.mxu0
    %v1660 = vadd.f32 %v1543, %v1659
    %v1661 = vpop.f32.mrf.mxu0
    %1662 = vdwg.mxu0
    %1663 = vmatpush.bf16.msra.mxu0 0
    %1664 = vmatpush.bf16.msra.mxu0 0
    %1665 = vmatpush.bf16.msra.mxu0 0
    %1666 = vmatpush.bf16.msra.mxu0 0
    %1667 = vmatpush.bf16.msra.mxu0 %v1620
    %1668 = vmatpush.bf16.msra.mxu0 %v1616
    %1669 = vmatpush.bf16.msra.mxu0 %v1612
    %1670 = vmatpush.bf16.msra.mxu0 %v1608
    %1671 = vmatmul.bf16.gmra.mxu0 %v1640
    %v1672 = vpop.f32.mrf.mxu0
    %v1673 = vadd.f32 %v1544, %v1672
    %v1674 = vpop.f32.mrf.mxu0
    %v1675 = vadd.f32 %v1544, %v1674
    %1676 = vmatmul.bf16.gmra.mxu0 %v1643
    %v1677 = vpop.f32.mrf.mxu0
    %v1678 = vadd.f32 %v1544, %v1677
    %v1679 = vpop.f32.mrf.mxu0
    %1680 = vdwg.mxu0
    %1681 = vmatpush.bf16.msra.mxu0 0
    %1682 = vmatpush.bf16.msra.mxu0 0
    %1683 = vmatpush.bf16.msra.mxu0 0
    %1684 = vmatpush.bf16.msra.mxu0 0
    %1685 = vmatpush.bf16.msra.mxu0 %v1621
    %1686 = vmatpush.bf16.msra.mxu0 %v1617
    %1687 = vmatpush.bf16.msra.mxu0 %v1613
    %1688 = vmatpush.bf16.msra.mxu0 %v1609
    %1689 = vmatmul.bf16.gmra.mxu0 %v1640
    %v1690 = vpop.f32.mrf.mxu0
    %v1691 = vadd.f32 %v1545, %v1690
    %v1692 = vpop.f32.mrf.mxu0
    %v1693 = vadd.f32 %v1545, %v1692
    %1694 = vmatmul.bf16.gmra.mxu0 %v1643
    %v1695 = vpop.f32.mrf.mxu0
    %v1696 = vadd.f32 %v1545, %v1695
    %v1697 = vpop.f32.mrf.mxu0
    %1698 = vdwg.mxu0
    %1699 = vmatpush.bf16.msra.mxu0 0
    %1700 = vmatpush.bf16.msra.mxu0 0
    %1701 = vmatpush.bf16.msra.mxu0 0
    %1702 = vmatpush.bf16.msra.mxu0 0
    %1703 = vmatpush.bf16.msra.mxu0 %v1622
    %1704 = vmatpush.bf16.msra.mxu0 %v1618
    %1705 = vmatpush.bf16.msra.mxu0 %v1614
    %1706 = vmatpush.bf16.msra.mxu0 %v1610
    %1707 = vmatmul.bf16.gmra.mxu0 %v1640
    %v1708 = vpop.f32.mrf.mxu0
    %v1709 = vadd.f32 %v1546, %v1708
    %v1710 = vpop.f32.mrf.mxu0
    %v1711 = vadd.f32 %v1546, %v1710
    %1712 = vmatmul.bf16.gmra.mxu0 %v1643
    %v1713 = vpop.f32.mrf.mxu0
    %v1714 = vadd.f32 %v1546, %v1713
    %v1715 = vpop.f32.mrf.mxu0
    %1716 = vdwg.mxu0
    %v1717 = vld [vmem:[#allocation9] sm:$0xff]
    %v1718 = vld [vmem:[#allocation9 + $0x8] sm:$0xff]
    %v1719 = vld [vmem:[#allocation9 + $0x10] sm:$0xff]
    %v1720 = vld [vmem:[#allocation9 + $0x18] sm:$0xff]
    %v1721 = vld [vmem:[#allocation9 + $0x20] sm:$0xff]
    %v1722 = vld [vmem:[#allocation9 + $0x28] sm:$0xff]
    %v1723 = vld [vmem:[#allocation9 + $0x30] sm:$0xff]
    %v1724 = vld [vmem:[#allocation9 + $0x38] sm:$0xff]
    %v1725 = vld [vmem:[#allocation9 + $0x40] sm:$0xff]
    %v1726 = vld [vmem:[#allocation9 + $0x48] sm:$0xff]
    %v1727 = vld [vmem:[#allocation9 + $0x50] sm:$0xff]
    %v1728 = vld [vmem:[#allocation9 + $0x58] sm:$0xff]
    %v1729 = vld [vmem:[#allocation9 + $0x60] sm:$0xff]
    %v1730 = vld [vmem:[#allocation9 + $0x68] sm:$0xff]
    %v1731 = vld [vmem:[#allocation9 + $0x70] sm:$0xff]
    %v1732 = vld [vmem:[#allocation9 + $0x78] sm:$0xff]
    %v1733 = vld [vmem:[#allocation12] sm:$0xf]
    %v1735 = vperm.slane %v1733, 0
    %v1736 = vperm.slane %v1733, 1
    %v1737 = vperm.slane %v1733, 2
    %v1738 = vperm.slane %v1733, 3
    %v1759 = vunpack.c.l.b16 %v1717
    %v1760 = vunpack.c.h.b16 %v1717
    %v1761 = vunpack.c.l.b16 %v1718
    %v1762 = vunpack.c.h.b16 %v1718
    %v1763 = vunpack.c.l.b16 %v1719
    %v1764 = vunpack.c.h.b16 %v1719
    %v1765 = vunpack.c.l.b16 %v1720
    %v1766 = vunpack.c.h.b16 %v1720
    %v1767 = vunpack.c.l.b16 %v1721
    %v1768 = vunpack.c.h.b16 %v1721
    %v1769 = vunpack.c.l.b16 %v1722
    %v1770 = vunpack.c.h.b16 %v1722
    %v1771 = vunpack.c.l.b16 %v1723
    %v1772 = vunpack.c.h.b16 %v1723
    %v1773 = vunpack.c.l.b16 %v1724
    %v1774 = vunpack.c.h.b16 %v1724
    %v1775 = vunpack.c.l.b16 %v1725
    %v1776 = vunpack.c.h.b16 %v1725
    %v1777 = vunpack.c.l.b16 %v1726
    %v1778 = vunpack.c.h.b16 %v1726
    %v1779 = vunpack.c.l.b16 %v1727
    %v1780 = vunpack.c.h.b16 %v1727
    %v1781 = vunpack.c.l.b16 %v1728
    %v1782 = vunpack.c.h.b16 %v1728
    %v1783 = vunpack.c.l.b16 %v1729
    %v1784 = vunpack.c.h.b16 %v1729
    %v1785 = vunpack.c.l.b16 %v1730
    %v1786 = vunpack.c.h.b16 %v1730
    %v1787 = vunpack.c.l.b16 %v1731
    %v1788 = vunpack.c.h.b16 %v1731
    %v1789 = vunpack.c.l.b16 %v1732
    %v1790 = vunpack.c.h.b16 %v1732
    %v1791 = vpack.c.b16 %v1763, %v1759
    %v1792 = vpack.c.b16 %v1764, %v1760
    %v1793 = vpack.c.b16 %v1765, %v1761
    %v1794 = vpack.c.b16 %v1766, %v1762
    %v1795 = vpack.c.b16 %v1771, %v1767
    %v1796 = vpack.c.b16 %v1772, %v1768
    %v1797 = vpack.c.b16 %v1773, %v1769
    %v1798 = vpack.c.b16 %v1774, %v1770
    %v1799 = vpack.c.b16 %v1779, %v1775
    %v1800 = vpack.c.b16 %v1780, %v1776
    %v1801 = vpack.c.b16 %v1781, %v1777
    %v1802 = vpack.c.b16 %v1782, %v1778
    %v1803 = vpack.c.b16 %v1787, %v1783
    %v1804 = vpack.c.b16 %v1788, %v1784
    %v1805 = vpack.c.b16 %v1789, %v1785
    %v1806 = vpack.c.b16 %v1790, %v1786
    %1823 = vmatpush.bf16.msra.mxu0 0
    %1824 = vmatpush.bf16.msra.mxu0 0
    %1825 = vmatpush.bf16.msra.mxu0 0
    %1826 = vmatpush.bf16.msra.mxu0 0
    %1827 = vmatpush.bf16.msra.mxu0 %v1803
    %1828 = vmatpush.bf16.msra.mxu0 %v1799
    %1829 = vmatpush.bf16.msra.mxu0 %v1795
    %1830 = vmatpush.bf16.msra.mxu0 %v1791
    %1831 = vmatmul.bf16.gmra.mxu0 %v1640
    %v1832 = vpop.f32.mrf.mxu0
    %v1833 = vadd.f32 %v1735, %v1832
    %v1834 = vpop.f32.mrf.mxu0
    %v1835 = vadd.f32 %v1735, %v1834
    %1836 = vmatmul.bf16.gmra.mxu0 %v1643
    %v1837 = vpop.f32.mrf.mxu0
    %v1838 = vadd.f32 %v1735, %v1837
    %v1839 = vpop.f32.mrf.mxu0
    %1840 = vdwg.mxu0
    %1841 = vmatpush.bf16.msra.mxu0 0
    %1842 = vmatpush.bf16.msra.mxu0 0
    %1843 = vmatpush.bf16.msra.mxu0 0
    %1844 = vmatpush.bf16.msra.mxu0 0
    %1845 = vmatpush.bf16.msra.mxu0 %v1804
    %1846 = vmatpush.bf16.msra.mxu0 %v1800
    %1847 = vmatpush.bf16.msra.mxu0 %v1796
    %1848 = vmatpush.bf16.msra.mxu0 %v1792
    %1849 = vmatmul.bf16.gmra.mxu0 %v1640
    %v1850 = vpop.f32.mrf.mxu0
    %v1851 = vadd.f32 %v1736, %v1850
    %v1852 = vpop.f32.mrf.mxu0
    %v1853 = vadd.f32 %v1736, %v1852
    %1854 = vmatmul.bf16.gmra.mxu0 %v1643
    %v1855 = vpop.f32.mrf.mxu0
    %v1856 = vadd.f32 %v1736, %v1855
    %v1857 = vpop.f32.mrf.mxu0
    %1858 = vdwg.mxu0
    %1859 = vmatpush.bf16.msra.mxu0 0
    %1860 = vmatpush.bf16.msra.mxu0 0
    %1861 = vmatpush.bf16.msra.mxu0 0
    %1862 = vmatpush.bf16.msra.mxu0 0
    %1863 = vmatpush.bf16.msra.mxu0 %v1805
    %1864 = vmatpush.bf16.msra.mxu0 %v1801
    %1865 = vmatpush.bf16.msra.mxu0 %v1797
    %1866 = vmatpush.bf16.msra.mxu0 %v1793
    %1867 = vmatmul.bf16.gmra.mxu0 %v1640
    %v1868 = vpop.f32.mrf.mxu0
    %v1869 = vadd.f32 %v1737, %v1868
    %v1870 = vpop.f32.mrf.mxu0
    %v1871 = vadd.f32 %v1737, %v1870
    %1872 = vmatmul.bf16.gmra.mxu0 %v1643
    %v1873 = vpop.f32.mrf.mxu0
    %v1874 = vadd.f32 %v1737, %v1873
    %v1875 = vpop.f32.mrf.mxu0
    %1876 = vdwg.mxu0
    %1877 = vmatpush.bf16.msra.mxu0 0
    %1878 = vmatpush.bf16.msra.mxu0 0
    %1879 = vmatpush.bf16.msra.mxu0 0
    %1880 = vmatpush.bf16.msra.mxu0 0
    %1881 = vmatpush.bf16.msra.mxu0 %v1806
    %1882 = vmatpush.bf16.msra.mxu0 %v1802
    %1883 = vmatpush.bf16.msra.mxu0 %v1798
    %1884 = vmatpush.bf16.msra.mxu0 %v1794
    %1885 = vmatmul.bf16.gmra.mxu0 %v1640
    %v1886 = vpop.f32.mrf.mxu0
    %v1887 = vadd.f32 %v1738, %v1886
    %v1888 = vpop.f32.mrf.mxu0
    %v1889 = vadd.f32 %v1738, %v1888
    %1890 = vmatmul.bf16.gmra.mxu0 %v1643
    %v1891 = vpop.f32.mrf.mxu0
    %v1892 = vadd.f32 %v1738, %v1891
    %v1893 = vpop.f32.mrf.mxu0
    %1894 = vdwg.mxu0
    %v1895 = vpack.c.bf16 %v1673, %v1655
    %v1896 = vpack.c.bf16 %v1709, %v1691
    %v1897 = vpack.c.bf16 %v1675, %v1657
    %v1898 = vpack.c.bf16 %v1711, %v1693
    %v1899 = vpack.c.bf16 %v1678, %v1660
    %v1900 = vpack.c.bf16 %v1714, %v1696
    %s1901 = scalar_lea.vmem [#allocation2], 528
    %1902 = vst [vmem:[%s1901] sm:$0xff] %v1895
    %1903 = vst [vmem:[%s1901 + $0x8] sm:$0xff] %v1896
    %1904 = vst [vmem:[%s1901 + $0x10] sm:$0xff] %v1897
    %1905 = vst [vmem:[%s1901 + $0x18] sm:$0xff] %v1898
    %1906 = vst [vmem:[%s1901 + $0x20] sm:$0xff] %v1899
    %1907 = vst [vmem:[%s1901 + $0x28] sm:$0xff] %v1900
    %v1908 = vpack.c.bf16 %v1851, %v1833
    %v1909 = vpack.c.bf16 %v1887, %v1869
    %v1910 = vpack.c.bf16 %v1853, %v1835
    %v1911 = vpack.c.bf16 %v1889, %v1871
    %v1912 = vpack.c.bf16 %v1856, %v1838
    %v1913 = vpack.c.bf16 %v1892, %v1874
    %s1914 = scalar_lea.vmem [#allocation3], 528
    %1915 = vst [vmem:[%s1914] sm:$0xff] %v1908
    %1916 = vst [vmem:[%s1914 + $0x8] sm:$0xff] %v1909
    %1917 = vst [vmem:[%s1914 + $0x10] sm:$0xff] %v1910
    %1918 = vst [vmem:[%s1914 + $0x18] sm:$0xff] %v1911
    %1919 = vst [vmem:[%s1914 + $0x20] sm:$0xff] %v1912
    %1920 = vst [vmem:[%s1914 + $0x28] sm:$0xff] %v1913
    loop: start=0, step=1, limit=12
    $region58: #{tpu_custom_call.1} parent=1 // loop_pre_header
      _
    $region59: #{tpu_custom_call.1} parent=1 // loop_header
      %s1922 = sphi 0, %s1926
      %p1923 = scmp.ge.s32.totalorder %s1922, 12
      %v1927 = vphi 0.0, %v2589
      %v1928 = vphi 0.0, %v2590
      %v1929 = vphi 0.0, %v2591
      %v1930 = vphi 0.0, %v2583
      %v1931 = vphi 0.0, %v2584
      %v1932 = vphi 0.0, %v2585
      %v1933 = vphi 0.0, %v2643
      %v1934 = vphi 0.0, %v2644
      %v1935 = vphi 0.0, %v2645
      %v1936 = vphi 0.0, %v2637
      %v1937 = vphi 0.0, %v2638
      %v1938 = vphi 0.0, %v2639
    $region60: #{tpu_custom_call.1} parent=1 // loop_header_branch
      %1925 = sbr.rel (%p1923) target = $region64
    $region61: #{tpu_custom_call.1} parent=1 // loop_body
      %s1939 = ssub.s32 11, %s1922
      %v1940 = vpack.c.bf16 %v1928, %v1927
      %v1941 = vpack.c.bf16 %v1929, %v1929
      %v1942 = vld [vmem:[#allocation13] sm:$0xff]
      %v1943 = vld [vmem:[#allocation13 + $0x8] sm:$0xff]
      %v1944 = vld [vmem:[#allocation13 + $0x10] sm:$0xff]
      %v1945 = vld [vmem:[#allocation13 + $0x18] sm:$0xff]
      %v1946 = vld [vmem:[#allocation13 + $0x20] sm:$0xff]
      %v1947 = vld [vmem:[#allocation13 + $0x28] sm:$0xff]
      %v1948 = vld [vmem:[#allocation13 + $0x30] sm:$0xff]
      %v1949 = vld [vmem:[#allocation13 + $0x38] sm:$0xff]
      %v1950 = vld [vmem:[#allocation13 + $0x40] sm:$0xff]
      %v1951 = vld [vmem:[#allocation13 + $0x48] sm:$0xff]
      %v1952 = vld [vmem:[#allocation13 + $0x50] sm:$0xff]
      %v1953 = vld [vmem:[#allocation13 + $0x58] sm:$0xff]
      %v1954 = vld [vmem:[#allocation13 + $0x60] sm:$0xff]
      %v1955 = vld [vmem:[#allocation13 + $0x68] sm:$0xff]
      %v1956 = vld [vmem:[#allocation13 + $0x70] sm:$0xff]
      %v1957 = vld [vmem:[#allocation13 + $0x78] sm:$0xff]
      %v1958 = vld [vmem:[#allocation13 + $0x80] sm:$0xff]
      %v1959 = vld [vmem:[#allocation13 + $0x88] sm:$0xff]
      %v1960 = vld [vmem:[#allocation13 + $0x90] sm:$0xff]
      %v1961 = vld [vmem:[#allocation13 + $0x98] sm:$0xff]
      %v1962 = vld [vmem:[#allocation13 + $0xa0] sm:$0xff]
      %v1963 = vld [vmem:[#allocation13 + $0xa8] sm:$0xff]
      %v1964 = vld [vmem:[#allocation13 + $0xb0] sm:$0xff]
      %v1965 = vld [vmem:[#allocation13 + $0xb8] sm:$0xff]
      %v1966 = vld [vmem:[#allocation13 + $0xc0] sm:$0xff]
      %v1967 = vld [vmem:[#allocation13 + $0xc8] sm:$0xff]
      %v1968 = vld [vmem:[#allocation13 + $0xd0] sm:$0xff]
      %v1969 = vld [vmem:[#allocation13 + $0xd8] sm:$0xff]
      %v1970 = vld [vmem:[#allocation13 + $0xe0] sm:$0xff]
      %v1971 = vld [vmem:[#allocation13 + $0xe8] sm:$0xff]
      %v1972 = vld [vmem:[#allocation13 + $0xf0] sm:$0xff]
      %v1973 = vld [vmem:[#allocation13 + $0xf8] sm:$0xff]
      %v2006 = vunpack.c.l.b16 %v1942
      %v2007 = vunpack.c.h.b16 %v1942
      %v2008 = vunpack.c.l.b16 %v1943
      %v2009 = vunpack.c.h.b16 %v1943
      %v2010 = vunpack.c.l.b16 %v1944
      %v2011 = vunpack.c.h.b16 %v1944
      %v2012 = vunpack.c.l.b16 %v1945
      %v2013 = vunpack.c.h.b16 %v1945
      %v2014 = vunpack.c.l.b16 %v1946
      %v2015 = vunpack.c.h.b16 %v1946
      %v2016 = vunpack.c.l.b16 %v1947
      %v2017 = vunpack.c.h.b16 %v1947
      %v2018 = vunpack.c.l.b16 %v1948
      %v2019 = vunpack.c.h.b16 %v1948
      %v2020 = vunpack.c.l.b16 %v1949
      %v2021 = vunpack.c.h.b16 %v1949
      %v2022 = vunpack.c.l.b16 %v1950
      %v2023 = vunpack.c.h.b16 %v1950
      %v2024 = vunpack.c.l.b16 %v1951
      %v2025 = vunpack.c.h.b16 %v1951
      %v2026 = vunpack.c.l.b16 %v1952
      %v2027 = vunpack.c.h.b16 %v1952
      %v2028 = vunpack.c.l.b16 %v1953
      %v2029 = vunpack.c.h.b16 %v1953
      %v2030 = vunpack.c.l.b16 %v1954
      %v2031 = vunpack.c.h.b16 %v1954
      %v2032 = vunpack.c.l.b16 %v1955
      %v2033 = vunpack.c.h.b16 %v1955
      %v2034 = vunpack.c.l.b16 %v1956
      %v2035 = vunpack.c.h.b16 %v1956
      %v2036 = vunpack.c.l.b16 %v1957
      %v2037 = vunpack.c.h.b16 %v1957
      %v2038 = vunpack.c.l.b16 %v1958
      %v2039 = vunpack.c.h.b16 %v1958
      %v2040 = vunpack.c.l.b16 %v1959
      %v2041 = vunpack.c.h.b16 %v1959
      %v2042 = vunpack.c.l.b16 %v1960
      %v2043 = vunpack.c.h.b16 %v1960
      %v2044 = vunpack.c.l.b16 %v1961
      %v2045 = vunpack.c.h.b16 %v1961
      %v2046 = vunpack.c.l.b16 %v1962
      %v2047 = vunpack.c.h.b16 %v1962
      %v2048 = vunpack.c.l.b16 %v1963
      %v2049 = vunpack.c.h.b16 %v1963
      %v2050 = vunpack.c.l.b16 %v1964
      %v2051 = vunpack.c.h.b16 %v1964
      %v2052 = vunpack.c.l.b16 %v1965
      %v2053 = vunpack.c.h.b16 %v1965
      %v2054 = vunpack.c.l.b16 %v1966
      %v2055 = vunpack.c.h.b16 %v1966
      %v2056 = vunpack.c.l.b16 %v1967
      %v2057 = vunpack.c.h.b16 %v1967
      %v2058 = vunpack.c.l.b16 %v1968
      %v2059 = vunpack.c.h.b16 %v1968
      %v2060 = vunpack.c.l.b16 %v1969
      %v2061 = vunpack.c.h.b16 %v1969
      %v2062 = vunpack.c.l.b16 %v1970
      %v2063 = vunpack.c.h.b16 %v1970
      %v2064 = vunpack.c.l.b16 %v1971
      %v2065 = vunpack.c.h.b16 %v1971
      %v2066 = vunpack.c.l.b16 %v1972
      %v2067 = vunpack.c.h.b16 %v1972
      %v2068 = vunpack.c.l.b16 %v1973
      %v2069 = vunpack.c.h.b16 %v1973
      %v2070 = vpack.c.b16 %v2010, %v2006
      %v2071 = vpack.c.b16 %v2011, %v2007
      %v2072 = vpack.c.b16 %v2012, %v2008
      %v2073 = vpack.c.b16 %v2013, %v2009
      %v2074 = vpack.c.b16 %v2018, %v2014
      %v2075 = vpack.c.b16 %v2019, %v2015
      %v2076 = vpack.c.b16 %v2020, %v2016
      %v2077 = vpack.c.b16 %v2021, %v2017
      %v2078 = vpack.c.b16 %v2026, %v2022
      %v2079 = vpack.c.b16 %v2027, %v2023
      %v2080 = vpack.c.b16 %v2028, %v2024
      %v2081 = vpack.c.b16 %v2029, %v2025
      %v2082 = vpack.c.b16 %v2034, %v2030
      %v2083 = vpack.c.b16 %v2035, %v2031
      %v2084 = vpack.c.b16 %v2036, %v2032
      %v2085 = vpack.c.b16 %v2037, %v2033
      %v2086 = vpack.c.b16 %v2042, %v2038
      %v2087 = vpack.c.b16 %v2043, %v2039
      %v2088 = vpack.c.b16 %v2044, %v2040
      %v2089 = vpack.c.b16 %v2045, %v2041
      %v2090 = vpack.c.b16 %v2050, %v2046
      %v2091 = vpack.c.b16 %v2051, %v2047
      %v2092 = vpack.c.b16 %v2052, %v2048
      %v2093 = vpack.c.b16 %v2053, %v2049
      %v2094 = vpack.c.b16 %v2058, %v2054
      %v2095 = vpack.c.b16 %v2059, %v2055
      %v2096 = vpack.c.b16 %v2060, %v2056
      %v2097 = vpack.c.b16 %v2061, %v2057
      %v2098 = vpack.c.b16 %v2066, %v2062
      %v2099 = vpack.c.b16 %v2067, %v2063
      %v2100 = vpack.c.b16 %v2068, %v2064
      %v2101 = vpack.c.b16 %v2069, %v2065
      %2134 = vmatpush.bf16.msra.mxu0 %v2098
      %2135 = vmatpush.bf16.msra.mxu0 %v2094
      %2136 = vmatpush.bf16.msra.mxu0 %v2090
      %2137 = vmatpush.bf16.msra.mxu0 %v2086
      %2138 = vmatpush.bf16.msra.mxu0 %v2082
      %2139 = vmatpush.bf16.msra.mxu0 %v2078
      %2140 = vmatpush.bf16.msra.mxu0 %v2074
      %2141 = vmatpush.bf16.msra.mxu0 %v2070
      %2142 = vmatmul.bf16.gmra.mxu0 %v1940
      %v2143 = vpop.f32.mrf.mxu0
      %v2144 = vadd.f32 0.0, %v2143
      %v2145 = vpop.f32.mrf.mxu0
      %v2146 = vadd.f32 0.0, %v2145
      %2147 = vmatmul.bf16.gmra.mxu0 %v1941
      %v2148 = vpop.f32.mrf.mxu0
      %v2149 = vadd.f32 0.0, %v2148
      %v2150 = vpop.f32.mrf.mxu0
      %2151 = vdwg.mxu0
      %2152 = vmatpush.bf16.msra.mxu0 %v2099
      %2153 = vmatpush.bf16.msra.mxu0 %v2095
      %2154 = vmatpush.bf16.msra.mxu0 %v2091
      %2155 = vmatpush.bf16.msra.mxu0 %v2087
      %2156 = vmatpush.bf16.msra.mxu0 %v2083
      %2157 = vmatpush.bf16.msra.mxu0 %v2079
      %2158 = vmatpush.bf16.msra.mxu0 %v2075
      %2159 = vmatpush.bf16.msra.mxu0 %v2071
      %2160 = vmatmul.bf16.gmra.mxu0 %v1940
      %v2161 = vpop.f32.mrf.mxu0
      %v2162 = vadd.f32 0.0, %v2161
      %v2163 = vpop.f32.mrf.mxu0
      %v2164 = vadd.f32 0.0, %v2163
      %2165 = vmatmul.bf16.gmra.mxu0 %v1941
      %v2166 = vpop.f32.mrf.mxu0
      %v2167 = vadd.f32 0.0, %v2166
      %v2168 = vpop.f32.mrf.mxu0
      %2169 = vdwg.mxu0
      %2170 = vmatpush.bf16.msra.mxu0 %v2100
      %2171 = vmatpush.bf16.msra.mxu0 %v2096
      %2172 = vmatpush.bf16.msra.mxu0 %v2092
      %2173 = vmatpush.bf16.msra.mxu0 %v2088
      %2174 = vmatpush.bf16.msra.mxu0 %v2084
      %2175 = vmatpush.bf16.msra.mxu0 %v2080
      %2176 = vmatpush.bf16.msra.mxu0 %v2076
      %2177 = vmatpush.bf16.msra.mxu0 %v2072
      %2178 = vmatmul.bf16.gmra.mxu0 %v1940
      %v2179 = vpop.f32.mrf.mxu0
      %v2180 = vadd.f32 0.0, %v2179
      %v2181 = vpop.f32.mrf.mxu0
      %v2182 = vadd.f32 0.0, %v2181
      %2183 = vmatmul.bf16.gmra.mxu0 %v1941
      %v2184 = vpop.f32.mrf.mxu0
      %v2185 = vadd.f32 0.0, %v2184
      %v2186 = vpop.f32.mrf.mxu0
      %2187 = vdwg.mxu0
      %2188 = vmatpush.bf16.msra.mxu0 %v2101
      %2189 = vmatpush.bf16.msra.mxu0 %v2097
      %2190 = vmatpush.bf16.msra.mxu0 %v2093
      %2191 = vmatpush.bf16.msra.mxu0 %v2089
      %2192 = vmatpush.bf16.msra.mxu0 %v2085
      %2193 = vmatpush.bf16.msra.mxu0 %v2081
      %2194 = vmatpush.bf16.msra.mxu0 %v2077
      %2195 = vmatpush.bf16.msra.mxu0 %v2073
      %2196 = vmatmul.bf16.gmra.mxu0 %v1940
      %v2197 = vpop.f32.mrf.mxu0
      %v2198 = vadd.f32 0.0, %v2197
      %v2199 = vpop.f32.mrf.mxu0
      %v2200 = vadd.f32 0.0, %v2199
      %2201 = vmatmul.bf16.gmra.mxu0 %v1941
      %v2202 = vpop.f32.mrf.mxu0
      %v2203 = vadd.f32 0.0, %v2202
      %v2204 = vpop.f32.mrf.mxu0
      %2205 = vdwg.mxu0
      %v2206 = vpack.c.bf16 %v1934, %v1933
      %v2207 = vpack.c.bf16 %v1935, %v1935
      %v2208 = vld [vmem:[#allocation15] sm:$0xff]
      %v2209 = vld [vmem:[#allocation15 + $0x8] sm:$0xff]
      %v2210 = vld [vmem:[#allocation15 + $0x10] sm:$0xff]
      %v2211 = vld [vmem:[#allocation15 + $0x18] sm:$0xff]
      %v2212 = vld [vmem:[#allocation15 + $0x20] sm:$0xff]
      %v2213 = vld [vmem:[#allocation15 + $0x28] sm:$0xff]
      %v2214 = vld [vmem:[#allocation15 + $0x30] sm:$0xff]
      %v2215 = vld [vmem:[#allocation15 + $0x38] sm:$0xff]
      %v2216 = vld [vmem:[#allocation15 + $0x40] sm:$0xff]
      %v2217 = vld [vmem:[#allocation15 + $0x48] sm:$0xff]
      %v2218 = vld [vmem:[#allocation15 + $0x50] sm:$0xff]
      %v2219 = vld [vmem:[#allocation15 + $0x58] sm:$0xff]
      %v2220 = vld [vmem:[#allocation15 + $0x60] sm:$0xff]
      %v2221 = vld [vmem:[#allocation15 + $0x68] sm:$0xff]
      %v2222 = vld [vmem:[#allocation15 + $0x70] sm:$0xff]
      %v2223 = vld [vmem:[#allocation15 + $0x78] sm:$0xff]
      %v2224 = vld [vmem:[#allocation15 + $0x80] sm:$0xff]
      %v2225 = vld [vmem:[#allocation15 + $0x88] sm:$0xff]
      %v2226 = vld [vmem:[#allocation15 + $0x90] sm:$0xff]
      %v2227 = vld [vmem:[#allocation15 + $0x98] sm:$0xff]
      %v2228 = vld [vmem:[#allocation15 + $0xa0] sm:$0xff]
      %v2229 = vld [vmem:[#allocation15 + $0xa8] sm:$0xff]
      %v2230 = vld [vmem:[#allocation15 + $0xb0] sm:$0xff]
      %v2231 = vld [vmem:[#allocation15 + $0xb8] sm:$0xff]
      %v2232 = vld [vmem:[#allocation15 + $0xc0] sm:$0xff]
      %v2233 = vld [vmem:[#allocation15 + $0xc8] sm:$0xff]
      %v2234 = vld [vmem:[#allocation15 + $0xd0] sm:$0xff]
      %v2235 = vld [vmem:[#allocation15 + $0xd8] sm:$0xff]
      %v2236 = vld [vmem:[#allocation15 + $0xe0] sm:$0xff]
      %v2237 = vld [vmem:[#allocation15 + $0xe8] sm:$0xff]
      %v2238 = vld [vmem:[#allocation15 + $0xf0] sm:$0xff]
      %v2239 = vld [vmem:[#allocation15 + $0xf8] sm:$0xff]
      %v2272 = vunpack.c.l.b16 %v2208
      %v2273 = vunpack.c.h.b16 %v2208
      %v2274 = vunpack.c.l.b16 %v2209
      %v2275 = vunpack.c.h.b16 %v2209
      %v2276 = vunpack.c.l.b16 %v2210
      %v2277 = vunpack.c.h.b16 %v2210
      %v2278 = vunpack.c.l.b16 %v2211
      %v2279 = vunpack.c.h.b16 %v2211
      %v2280 = vunpack.c.l.b16 %v2212
      %v2281 = vunpack.c.h.b16 %v2212
      %v2282 = vunpack.c.l.b16 %v2213
      %v2283 = vunpack.c.h.b16 %v2213
      %v2284 = vunpack.c.l.b16 %v2214
      %v2285 = vunpack.c.h.b16 %v2214
      %v2286 = vunpack.c.l.b16 %v2215
      %v2287 = vunpack.c.h.b16 %v2215
      %v2288 = vunpack.c.l.b16 %v2216
      %v2289 = vunpack.c.h.b16 %v2216
      %v2290 = vunpack.c.l.b16 %v2217
      %v2291 = vunpack.c.h.b16 %v2217
      %v2292 = vunpack.c.l.b16 %v2218
      %v2293 = vunpack.c.h.b16 %v2218
      %v2294 = vunpack.c.l.b16 %v2219
      %v2295 = vunpack.c.h.b16 %v2219
      %v2296 = vunpack.c.l.b16 %v2220
      %v2297 = vunpack.c.h.b16 %v2220
      %v2298 = vunpack.c.l.b16 %v2221
      %v2299 = vunpack.c.h.b16 %v2221
      %v2300 = vunpack.c.l.b16 %v2222
      %v2301 = vunpack.c.h.b16 %v2222
      %v2302 = vunpack.c.l.b16 %v2223
      %v2303 = vunpack.c.h.b16 %v2223
      %v2304 = vunpack.c.l.b16 %v2224
      %v2305 = vunpack.c.h.b16 %v2224
      %v2306 = vunpack.c.l.b16 %v2225
      %v2307 = vunpack.c.h.b16 %v2225
      %v2308 = vunpack.c.l.b16 %v2226
      %v2309 = vunpack.c.h.b16 %v2226
      %v2310 = vunpack.c.l.b16 %v2227
      %v2311 = vunpack.c.h.b16 %v2227
      %v2312 = vunpack.c.l.b16 %v2228
      %v2313 = vunpack.c.h.b16 %v2228
      %v2314 = vunpack.c.l.b16 %v2229
      %v2315 = vunpack.c.h.b16 %v2229
      %v2316 = vunpack.c.l.b16 %v2230
      %v2317 = vunpack.c.h.b16 %v2230
      %v2318 = vunpack.c.l.b16 %v2231
      %v2319 = vunpack.c.h.b16 %v2231
      %v2320 = vunpack.c.l.b16 %v2232
      %v2321 = vunpack.c.h.b16 %v2232
      %v2322 = vunpack.c.l.b16 %v2233
      %v2323 = vunpack.c.h.b16 %v2233
      %v2324 = vunpack.c.l.b16 %v2234
      %v2325 = vunpack.c.h.b16 %v2234
      %v2326 = vunpack.c.l.b16 %v2235
      %v2327 = vunpack.c.h.b16 %v2235
      %v2328 = vunpack.c.l.b16 %v2236
      %v2329 = vunpack.c.h.b16 %v2236
      %v2330 = vunpack.c.l.b16 %v2237
      %v2331 = vunpack.c.h.b16 %v2237
      %v2332 = vunpack.c.l.b16 %v2238
      %v2333 = vunpack.c.h.b16 %v2238
      %v2334 = vunpack.c.l.b16 %v2239
      %v2335 = vunpack.c.h.b16 %v2239
      %v2336 = vpack.c.b16 %v2276, %v2272
      %v2337 = vpack.c.b16 %v2277, %v2273
      %v2338 = vpack.c.b16 %v2278, %v2274
      %v2339 = vpack.c.b16 %v2279, %v2275
      %v2340 = vpack.c.b16 %v2284, %v2280
      %v2341 = vpack.c.b16 %v2285, %v2281
      %v2342 = vpack.c.b16 %v2286, %v2282
      %v2343 = vpack.c.b16 %v2287, %v2283
      %v2344 = vpack.c.b16 %v2292, %v2288
      %v2345 = vpack.c.b16 %v2293, %v2289
      %v2346 = vpack.c.b16 %v2294, %v2290
      %v2347 = vpack.c.b16 %v2295, %v2291
      %v2348 = vpack.c.b16 %v2300, %v2296
      %v2349 = vpack.c.b16 %v2301, %v2297
      %v2350 = vpack.c.b16 %v2302, %v2298
      %v2351 = vpack.c.b16 %v2303, %v2299
      %v2352 = vpack.c.b16 %v2308, %v2304
      %v2353 = vpack.c.b16 %v2309, %v2305
      %v2354 = vpack.c.b16 %v2310, %v2306
      %v2355 = vpack.c.b16 %v2311, %v2307
      %v2356 = vpack.c.b16 %v2316, %v2312
      %v2357 = vpack.c.b16 %v2317, %v2313
      %v2358 = vpack.c.b16 %v2318, %v2314
      %v2359 = vpack.c.b16 %v2319, %v2315
      %v2360 = vpack.c.b16 %v2324, %v2320
      %v2361 = vpack.c.b16 %v2325, %v2321
      %v2362 = vpack.c.b16 %v2326, %v2322
      %v2363 = vpack.c.b16 %v2327, %v2323
      %v2364 = vpack.c.b16 %v2332, %v2328
      %v2365 = vpack.c.b16 %v2333, %v2329
      %v2366 = vpack.c.b16 %v2334, %v2330
      %v2367 = vpack.c.b16 %v2335, %v2331
      %2400 = vmatpush.bf16.msra.mxu0 %v2364
      %2401 = vmatpush.bf16.msra.mxu0 %v2360
      %2402 = vmatpush.bf16.msra.mxu0 %v2356
      %2403 = vmatpush.bf16.msra.mxu0 %v2352
      %2404 = vmatpush.bf16.msra.mxu0 %v2348
      %2405 = vmatpush.bf16.msra.mxu0 %v2344
      %2406 = vmatpush.bf16.msra.mxu0 %v2340
      %2407 = vmatpush.bf16.msra.mxu0 %v2336
      %2408 = vmatmul.bf16.gmra.mxu0 %v2206
      %v2409 = vpop.f32.mrf.mxu0
      %v2410 = vadd.f32 0.0, %v2409
      %v2411 = vpop.f32.mrf.mxu0
      %v2412 = vadd.f32 0.0, %v2411
      %2413 = vmatmul.bf16.gmra.mxu0 %v2207
      %v2414 = vpop.f32.mrf.mxu0
      %v2415 = vadd.f32 0.0, %v2414
      %v2416 = vpop.f32.mrf.mxu0
      %2417 = vdwg.mxu0
      %2418 = vmatpush.bf16.msra.mxu0 %v2365
      %2419 = vmatpush.bf16.msra.mxu0 %v2361
      %2420 = vmatpush.bf16.msra.mxu0 %v2357
      %2421 = vmatpush.bf16.msra.mxu0 %v2353
      %2422 = vmatpush.bf16.msra.mxu0 %v2349
      %2423 = vmatpush.bf16.msra.mxu0 %v2345
      %2424 = vmatpush.bf16.msra.mxu0 %v2341
      %2425 = vmatpush.bf16.msra.mxu0 %v2337
      %2426 = vmatmul.bf16.gmra.mxu0 %v2206
      %v2427 = vpop.f32.mrf.mxu0
      %v2428 = vadd.f32 0.0, %v2427
      %v2429 = vpop.f32.mrf.mxu0
      %v2430 = vadd.f32 0.0, %v2429
      %2431 = vmatmul.bf16.gmra.mxu0 %v2207
      %v2432 = vpop.f32.mrf.mxu0
      %v2433 = vadd.f32 0.0, %v2432
      %v2434 = vpop.f32.mrf.mxu0
      %2435 = vdwg.mxu0
      %2436 = vmatpush.bf16.msra.mxu0 %v2366
      %2437 = vmatpush.bf16.msra.mxu0 %v2362
      %2438 = vmatpush.bf16.msra.mxu0 %v2358
      %2439 = vmatpush.bf16.msra.mxu0 %v2354
      %2440 = vmatpush.bf16.msra.mxu0 %v2350
      %2441 = vmatpush.bf16.msra.mxu0 %v2346
      %2442 = vmatpush.bf16.msra.mxu0 %v2342
      %2443 = vmatpush.bf16.msra.mxu0 %v2338
      %2444 = vmatmul.bf16.gmra.mxu0 %v2206
      %v2445 = vpop.f32.mrf.mxu0
      %v2446 = vadd.f32 0.0, %v2445
      %v2447 = vpop.f32.mrf.mxu0
      %v2448 = vadd.f32 0.0, %v2447
      %2449 = vmatmul.bf16.gmra.mxu0 %v2207
      %v2450 = vpop.f32.mrf.mxu0
      %v2451 = vadd.f32 0.0, %v2450
      %v2452 = vpop.f32.mrf.mxu0
      %2453 = vdwg.mxu0
      %2454 = vmatpush.bf16.msra.mxu0 %v2367
      %2455 = vmatpush.bf16.msra.mxu0 %v2363
      %2456 = vmatpush.bf16.msra.mxu0 %v2359
      %2457 = vmatpush.bf16.msra.mxu0 %v2355
      %2458 = vmatpush.bf16.msra.mxu0 %v2351
      %2459 = vmatpush.bf16.msra.mxu0 %v2347
      %2460 = vmatpush.bf16.msra.mxu0 %v2343
      %2461 = vmatpush.bf16.msra.mxu0 %v2339
      %2462 = vmatmul.bf16.gmra.mxu0 %v2206
      %v2463 = vpop.f32.mrf.mxu0
      %v2464 = vadd.f32 0.0, %v2463
      %v2465 = vpop.f32.mrf.mxu0
      %v2466 = vadd.f32 0.0, %v2465
      %2467 = vmatmul.bf16.gmra.mxu0 %v2207
      %v2468 = vpop.f32.mrf.mxu0
      %v2469 = vadd.f32 0.0, %v2468
      %v2470 = vpop.f32.mrf.mxu0
      %2471 = vdwg.mxu0
      %s2472 = smul.u32 %s1922, 12
      %s2473 = smul.addr %s2472, 4
      %s2474 = scalar_lea.vmem [#allocation2], %s2473
      %v2475 = vld [vmem:[%s2474] sm:$0xff]
      %v2476 = vld [vmem:[%s2474 + $0x8] sm:$0xff]
      %v2477 = vld [vmem:[%s2474 + $0x10] sm:$0xff]
      %v2478 = vld [vmem:[%s2474 + $0x18] sm:$0xff]
      %v2479 = vld [vmem:[%s2474 + $0x20] sm:$0xff]
      %v2480 = vld [vmem:[%s2474 + $0x28] sm:$0xff]
      %v2481 = vunpack.c.l.bf16 %v2475
      %v2482 = vunpack.c.h.bf16 %v2475
      %v2483 = vunpack.c.l.bf16 %v2476
      %v2484 = vunpack.c.h.bf16 %v2476
      %v2485 = vunpack.c.l.bf16 %v2477
      %v2486 = vunpack.c.h.bf16 %v2477
      %v2487 = vunpack.c.l.bf16 %v2478
      %v2488 = vunpack.c.h.bf16 %v2478
      %v2489 = vunpack.c.l.bf16 %v2479
      %v2490 = vunpack.c.h.bf16 %v2479
      %v2491 = vunpack.c.l.bf16 %v2480
      %v2492 = vunpack.c.h.bf16 %v2480
      %v2493 = vadd.f32 %v2481, %v2144
      %v2494 = vadd.f32 %v2482, %v2162
      %v2495 = vadd.f32 %v2483, %v2180
      %v2496 = vadd.f32 %v2484, %v2198
      %v2497 = vadd.f32 %v2485, %v2146
      %v2498 = vadd.f32 %v2486, %v2164
      %v2499 = vadd.f32 %v2487, %v2182
      %v2500 = vadd.f32 %v2488, %v2200
      %v2501 = vadd.f32 %v2489, %v2149
      %v2502 = vadd.f32 %v2490, %v2167
      %v2503 = vadd.f32 %v2491, %v2185
      %v2504 = vadd.f32 %v2492, %v2203
      %s2505 = smul.u32 %s1939, 12
      %s2506 = smul.addr %s2505, 4
      %s2507 = scalar_lea.vmem [#allocation3], %s2506
      %v2508 = vld [vmem:[%s2507] sm:$0xff]
      %v2509 = vld [vmem:[%s2507 + $0x8] sm:$0xff]
      %v2510 = vld [vmem:[%s2507 + $0x10] sm:$0xff]
      %v2511 = vld [vmem:[%s2507 + $0x18] sm:$0xff]
      %v2512 = vld [vmem:[%s2507 + $0x20] sm:$0xff]
      %v2513 = vld [vmem:[%s2507 + $0x28] sm:$0xff]
      %v2514 = vunpack.c.l.bf16 %v2508
      %v2515 = vunpack.c.h.bf16 %v2508
      %v2516 = vunpack.c.l.bf16 %v2509
      %v2517 = vunpack.c.h.bf16 %v2509
      %v2518 = vunpack.c.l.bf16 %v2510
      %v2519 = vunpack.c.h.bf16 %v2510
      %v2520 = vunpack.c.l.bf16 %v2511
      %v2521 = vunpack.c.h.bf16 %v2511
      %v2522 = vunpack.c.l.bf16 %v2512
      %v2523 = vunpack.c.h.bf16 %v2512
      %v2524 = vunpack.c.l.bf16 %v2513
      %v2525 = vunpack.c.h.bf16 %v2513
      %v2526 = vadd.f32 %v2514, %v2410
      %v2527 = vadd.f32 %v2515, %v2428
      %v2528 = vadd.f32 %v2516, %v2446
      %v2529 = vadd.f32 %v2517, %v2464
      %v2530 = vadd.f32 %v2518, %v2412
      %v2531 = vadd.f32 %v2519, %v2430
      %v2532 = vadd.f32 %v2520, %v2448
      %v2533 = vadd.f32 %v2521, %v2466
      %v2534 = vadd.f32 %v2522, %v2415
      %v2535 = vadd.f32 %v2523, %v2433
      %v2536 = vadd.f32 %v2524, %v2451
      %v2537 = vadd.f32 %v2525, %v2469
      %v2538 = vmul.f32 %v2493, 0.5
      %v2539 = vmul.f32 %v2494, 0.5
      %v2540 = vmul.f32 %v2495, 0.5
      %v2541 = vmul.f32 %v2497, 0.5
      %v2542 = vmul.f32 %v2498, 0.5
      %v2543 = vmul.f32 %v2499, 0.5
      %v2544 = vmul.f32 %v2501, 0.5
      %v2545 = vmul.f32 %v2502, 0.5
      %v2546 = vmul.f32 %v2503, 0.5
      %v2547 = vtanh.pop %v2538
      %v2548 = vtanh.pop %v2539
      %v2549 = vtanh.pop %v2540
      %v2550 = vtanh.pop %v2541
      %v2551 = vtanh.pop %v2542
      %v2552 = vtanh.pop %v2543
      %v2553 = vtanh.pop %v2544
      %v2554 = vtanh.pop %v2545
      %v2555 = vtanh.pop %v2546
      %v2556 = vadd.f32 %v2547, 1.0
      %v2557 = vadd.f32 %v2548, 1.0
      %v2558 = vadd.f32 %v2549, 1.0
      %v2559 = vadd.f32 %v2550, 1.0
      %v2560 = vadd.f32 %v2551, 1.0
      %v2561 = vadd.f32 %v2552, 1.0
      %v2562 = vadd.f32 %v2553, 1.0
      %v2563 = vadd.f32 %v2554, 1.0
      %v2564 = vadd.f32 %v2555, 1.0
      %v2565 = vmul.f32 %v2556, 0.5
      %v2566 = vmul.f32 %v2557, 0.5
      %v2567 = vmul.f32 %v2558, 0.5
      %v2568 = vmul.f32 %v2559, 0.5
      %v2569 = vmul.f32 %v2560, 0.5
      %v2570 = vmul.f32 %v2561, 0.5
      %v2571 = vmul.f32 %v2562, 0.5
      %v2572 = vmul.f32 %v2563, 0.5
      %v2573 = vmul.f32 %v2564, 0.5
      %v2574 = vtanh.pop %v2496
      %v2575 = vtanh.pop %v2500
      %v2576 = vtanh.pop %v2504
      %v2577 = vmul.f32 %v2566, %v1930
      %v2578 = vmul.f32 %v2569, %v1931
      %v2579 = vmul.f32 %v2572, %v1932
      %v2580 = vmul.f32 %v2565, %v2574
      %v2581 = vmul.f32 %v2568, %v2575
      %v2582 = vmul.f32 %v2571, %v2576
      %v2583 = vadd.f32 %v2577, %v2580
      %v2584 = vadd.f32 %v2578, %v2581
      %v2585 = vadd.f32 %v2579, %v2582
      %v2586 = vtanh.pop %v2583
      %v2587 = vtanh.pop %v2584
      %v2588 = vtanh.pop %v2585
      %v2589 = vmul.f32 %v2567, %v2586
      %v2590 = vmul.f32 %v2570, %v2587
      %v2591 = vmul.f32 %v2573, %v2588
      %v2592 = vmul.f32 %v2526, 0.5
      %v2593 = vmul.f32 %v2527, 0.5
      %v2594 = vmul.f32 %v2528, 0.5
      %v2595 = vmul.f32 %v2530, 0.5
      %v2596 = vmul.f32 %v2531, 0.5
      %v2597 = vmul.f32 %v2532, 0.5
      %v2598 = vmul.f32 %v2534, 0.5
      %v2599 = vmul.f32 %v2535, 0.5
      %v2600 = vmul.f32 %v2536, 0.5
      %v2601 = vtanh.pop %v2592
      %v2602 = vtanh.pop %v2593
      %v2603 = vtanh.pop %v2594
      %v2604 = vtanh.pop %v2595
      %v2605 = vtanh.pop %v2596
      %v2606 = vtanh.pop %v2597
      %v2607 = vtanh.pop %v2598
      %v2608 = vtanh.pop %v2599
      %v2609 = vtanh.pop %v2600
      %v2610 = vadd.f32 %v2601, 1.0
      %v2611 = vadd.f32 %v2602, 1.0
      %v2612 = vadd.f32 %v2603, 1.0
      %v2613 = vadd.f32 %v2604, 1.0
      %v2614 = vadd.f32 %v2605, 1.0
      %v2615 = vadd.f32 %v2606, 1.0
      %v2616 = vadd.f32 %v2607, 1.0
      %v2617 = vadd.f32 %v2608, 1.0
      %v2618 = vadd.f32 %v2609, 1.0
      %v2619 = vmul.f32 %v2610, 0.5
      %v2620 = vmul.f32 %v2611, 0.5
      %v2621 = vmul.f32 %v2612, 0.5
      %v2622 = vmul.f32 %v2613, 0.5
      %v2623 = vmul.f32 %v2614, 0.5
      %v2624 = vmul.f32 %v2615, 0.5
      %v2625 = vmul.f32 %v2616, 0.5
      %v2626 = vmul.f32 %v2617, 0.5
      %v2627 = vmul.f32 %v2618, 0.5
      %v2628 = vtanh.pop %v2529
      %v2629 = vtanh.pop %v2533
      %v2630 = vtanh.pop %v2537
      %v2631 = vmul.f32 %v2620, %v1936
      %v2632 = vmul.f32 %v2623, %v1937
      %v2633 = vmul.f32 %v2626, %v1938
      %v2634 = vmul.f32 %v2619, %v2628
      %v2635 = vmul.f32 %v2622, %v2629
      %v2636 = vmul.f32 %v2625, %v2630
      %v2637 = vadd.f32 %v2631, %v2634
      %v2638 = vadd.f32 %v2632, %v2635
      %v2639 = vadd.f32 %v2633, %v2636
      %v2640 = vtanh.pop %v2637
      %v2641 = vtanh.pop %v2638
      %v2642 = vtanh.pop %v2639
      %v2643 = vmul.f32 %v2621, %v2640
      %v2644 = vmul.f32 %v2624, %v2641
      %v2645 = vmul.f32 %v2627, %v2642
      %s2646 = smul.u32 %s1922, 6
      %s2647 = smul.addr %s2646, 8
      %s2648 = scalar_lea.vmem [#allocation16], %s2647
      %2649 = vst [vmem:[%s2648] sm:$0xff] %v2589
      %2650 = vst [vmem:[%s2648 + $0x10] sm:$0xff] %v2590
      %2651 = vst [vmem:[%s2648 + $0x20] sm:$0xff] %v2591
      %s2652 = smul.u32 %s1939, 6
      %s2653 = smul.addr %s2652, 8
      %s2654 = scalar_lea.vmem [#allocation16], %s2653
      %2655 = vst [vmem:[%s2654 + $0x8] sm:$0xff] %v2643
      %2656 = vst [vmem:[%s2654 + $0x18] sm:$0xff] %v2644
      %2657 = vst [vmem:[%s2654 + $0x28] sm:$0xff] %v2645
    $region62: #{tpu_custom_call.1} parent=1 // loop_footer
      %s1926 = sadd.s32 1, %s1922
    $region63: #{tpu_custom_call.1} parent=1 // loop_footer_branch
      %1921 = sbr.rel target = $region59
    $region64: #{tpu_custom_call.1} parent=1 // loop_exit
      _
    // Predicated region
    $region65: #{tpu_custom_call.1} parent=1 // pred_check
      _
    $region66: #{tpu_custom_call.1} parent=1 // pred_check_branch
      %2659 = sbr.rel (0) target = $region68
    $region67: #{tpu_custom_call.1} parent=1 // pred_region
      %2661 = vsyncadd [#allocation6], 0
      %s2662 = sshll.u32 [#allocation16], 4
      %s2663 = int_to_ptr.vmem [resolvable:$true] %s2662
      %s2664 = sshll.u32 %s7, 4
      %s2665 = int_to_ptr.hbm [resolvable:$true] %s2664
      %2670 = dma.vmem_to_hbm [thread:$0]  %s2663, 9216, %s2665, [#allocation6], 256, 256, 16
    $region68: #{tpu_custom_call.1} parent=1 // pred_fallthru
      _
    // Predicated region
    $region69: #{tpu_custom_call.1} parent=1 // pred_check
      _
    $region70: #{tpu_custom_call.1} parent=1 // pred_check_branch
      %2672 = sbr.rel (0) target = $region72
    $region71: #{tpu_custom_call.1} parent=1 // pred_region
      %2674 = dma.done [#allocation6], 9216
    $region72: #{tpu_custom_call.1} parent=1 // pred_fallthru
      _
    %2675 = vsyncpa [#allocation5], 1
    %2676 = vsyncpa [#allocation8], 1
    %2677 = vsyncpa [#allocation11], 1
    %2678 = vsyncpa [#allocation14], 1
    %2679 = vsyncpa [#allocation6], 1

</llo_original>
